<compile_context>
chip_gen: v5e
topology: v5e:2x2
jax: 0.10.0
libtpu: 0.0.40
codegen_flags: <defaults>
</compile_context>

<pallas_src>
import math
import functools

import jax
import jax.numpy as jnp
from jax import lax
from jax.experimental import pallas as pl
from jax.experimental.pallas import tpu as pltpu


def _lem_kernel(x_ref, dt_ref, noise_ref,
                wih_ref, bih_ref, whh_ref, wtz_ref, btz_ref,
                wst_ref, bst_ref, wcls_ref, bcls_ref,
                out_ref, ys_scr,
                *, T, B, nhid, dt_cell, ycoeff, zcoeff, version):
    f32 = jnp.float32

    # ---- state-independent work, hoisted out of the serial recurrence ----
    # Input projection for all T*B rows; gate order [dt1, dt2, y, z], biases fused.
    x_proj = (jnp.dot(x_ref[...], wih_ref[...], preferred_element_type=f32)
              + bih_ref[...])                                    # (T*B, 4*nhid)

    # Stochastic-noise transform for all T*B rows (versions 0/1/2 are state-free).
    stoch = (jnp.dot(noise_ref[...], wst_ref[...], preferred_element_type=f32)
             + bst_ref[...])                                     # (T*B, 2*nhid)
    delta = dt_ref[...]                                          # (T*B, ndt) -> broadcast
    if version == 0:
        stoch = jnp.tanh(stoch) * delta
    elif version == 1:
        stoch = jnp.tanh(stoch * jnp.sqrt(delta))
    elif version == 2:
        stoch = jnp.tanh(stoch)
    else:
        # TODO(synk): version 4 (scalar-broadcast noise slice) not implemented.
        raise ValueError("unsupported LEMStoch version")
    noise_y = ycoeff * stoch[:, 0:nhid]                          # (T*B, nhid)
    noise_z = zcoeff * stoch[:, nhid:2 * nhid]                   # (T*B, nhid)

    # Hoist loop-invariant loads.
    whh = whh_ref[...]          # (nhid, 3*nhid)   columns [dt1, dt2, y]
    wtz = wtz_ref[...]          # (nhid, nhid)
    btz = btz_ref[...]          # (1, nhid)

    y = jnp.zeros((B, nhid), f32)
    z = jnp.zeros((B, nhid), f32)

    # T is small & static -> fully unrolled; only the two state-dependent
    # matmuls (hid2hid, transform_z) sit on the serial critical path.
    for t in range(T):
        lo, hi = t * B, (t + 1) * B
        g = x_proj[lo:hi]                                        # (B, 4*nhid)
        hid = jnp.dot(y, whh, preferred_element_type=f32)        # (B, 3*nhid)

        g_dt1 = g[:, 0 * nhid:1 * nhid] + hid[:, 0 * nhid:1 * nhid]
        g_dt2 = g[:, 1 * nhid:2 * nhid] + hid[:, 1 * nhid:2 * nhid]
        g_y = g[:, 2 * nhid:3 * nhid] + hid[:, 2 * nhid:3 * nhid]
        i_z = g[:, 3 * nhid:4 * nhid]

        ms_dt_bar = dt_cell * jax.nn.sigmoid(g_dt1)
        ms_dt = dt_cell * jax.nn.sigmoid(g_dt2)
        z = (1.0 - ms_dt) * z + ms_dt * jnp.tanh(g_y)
        y = (1.0 - ms_dt_bar) * y + ms_dt_bar * jnp.tanh(
            jnp.dot(z, wtz, preferred_element_type=f32) + btz + i_z)

        # stochastic noise injection (same-step delta, applied after cell update)
        y = y + noise_y[lo:hi]
        z = z + noise_z[lo:hi]

        ys_scr[lo:hi, :] = y

    # ---- classifier: one matmul + one store after the loop ----
    out_ref[...] = (jnp.dot(ys_scr[...], wcls_ref[...], preferred_element_type=f32)
                    + bcls_ref[...]).astype(out_ref.dtype)


def lem_forward(inp, dt, noise, params, *, ycoeff, zcoeff, version=0, dt_cell=1.0):
    """inp: (T, B, nfeat), dt: (T, B, ndt), noise: (T, B, 2*nhid) -> (T, B, nout)."""
    T, B, nfeat = inp.shape
    ndt = dt.shape[-1]
    nhid = params["w_hh"].shape[0] // 3
    nout = params["w_cls"].shape[0]
    ninp = nfeat + ndt

    # --- glue: flatten time into rows, concat(inp, dt), pre-transpose weights ---
    x_flat = jnp.concatenate([inp, dt], axis=-1).reshape(T * B, ninp)
    dt_flat = dt.reshape(T * B, ndt)
    noise_flat = noise.reshape(T * B, 2 * nhid)

    # inp2hid columns are [dt1, dt2, z, y]; reorder to [dt1, dt2, y, z] so the
    # first 3 chunks align with hid2hid's [dt1, dt2, y], and fold b_ih + b_hh.
    wih_t = params["w_ih"].T                                     # (ninp, 4*nhid)
    wih_f = jnp.concatenate(
        [wih_t[:, 0:nhid], wih_t[:, nhid:2 * nhid],
         wih_t[:, 3 * nhid:4 * nhid], wih_t[:, 2 * nhid:3 * nhid]], axis=1)
    b_ih, b_hh = params["b_ih"], params["b_hh"]
    bih_f = jnp.concatenate(
        [b_ih[0:nhid] + b_hh[0:nhid],
         b_ih[nhid:2 * nhid] + b_hh[nhid:2 * nhid],
         b_ih[3 * nhid:4 * nhid] + b_hh[2 * nhid:3 * nhid],
         b_ih[2 * nhid:3 * nhid]]).reshape(1, 4 * nhid)

    whh_t = params["w_hh"].T                                     # (nhid, 3*nhid)
    wtz_t = params["w_tz"].T                                     # (nhid, nhid)
    btz2 = params["b_tz"].reshape(1, nhid)
    wst_t = params["w_st"].T                                     # (2*nhid, 2*nhid)
    bst2 = params["b_st"].reshape(1, 2 * nhid)
    wcls_t = params["w_cls"].T                                   # (nhid, nout)
    bcls2 = params["b_cls"].reshape(1, nout)

    kernel = functools.partial(
        _lem_kernel, T=T, B=B, nhid=nhid, dt_cell=float(dt_cell),
        ycoeff=float(ycoeff), zcoeff=float(zcoeff), version=int(version))

    vmem = pl.BlockSpec(memory_space=pltpu.MemorySpace.VMEM)
    out_flat = pl.pallas_call(
        kernel,
        out_shape=jax.ShapeDtypeStruct((T * B, nout), jnp.float32),
        in_specs=[vmem] * 12,
        out_specs=vmem,
        scratch_shapes=[pltpu.VMEM((T * B, nhid), jnp.float32)],  # y_hidds
    )(x_flat, dt_flat, noise_flat,
      wih_f, bih_f, whh_t, wtz_t, btz2, wst_t, bst2, wcls_t, bcls2)

    return out_flat.reshape(T, B, nout)


def init_params(key, ninp, nhid, nout):
    """Init mirroring PyTorch: cell params uniform(+-1/sqrt(nhid)), stoch_linear /
    classifier default nn.Linear init, classifier.weight kaiming_normal_."""
    k = jax.random.split(key, 10)
    std = 1.0 / math.sqrt(nhid)
    std_st = 1.0 / math.sqrt(2 * nhid)
    u = lambda kk, shape, b: jax.random.uniform(kk, shape, jnp.float32, -b, b)
    return {
        "w_ih": u(k[0], (4 * nhid, ninp), std),
        "b_ih": u(k[1], (4 * nhid,), std),
        "w_hh": u(k[2], (3 * nhid, nhid), std),
        "b_hh": u(k[3], (3 * nhid,), std),
        "w_tz": u(k[4], (nhid, nhid), std),
        "b_tz": u(k[5], (nhid,), std),
        "w_st": u(k[6], (2 * nhid, 2 * nhid), std_st),
        "b_st": u(k[7], (2 * nhid,), std_st),
        # kaiming_normal_(fan_in = nhid), gain = sqrt(2)
        "w_cls": jax.random.normal(k[8], (nout, nhid), jnp.float32)
                 * math.sqrt(2.0 / nhid),
        "b_cls": u(k[9], (nout,), 1.0 / math.sqrt(nhid)),
    }


def lem_forward_ref(inp, dt, noise, params, *, ycoeff, zcoeff, version=0, dt_cell=1.0):
    """Pure-JAX reference (lax.scan) matching the PyTorch forward."""
    T, B, _ = inp.shape
    nhid = params["w_hh"].shape[0] // 3

    def step(carry, xs):
        y, z = carry
        inp_t, d_t, n_t = xs
        x_t = jnp.concatenate([inp_t, d_t], axis=-1)
        ti = x_t @ params["w_ih"].T + params["b_ih"]
        th = y @ params["w_hh"].T + params["b_hh"]
        i_dt1, i_dt2, i_z, i_y = jnp.split(ti, 4, axis=-1)
        h_dt1, h_dt2, h_y = jnp.split(th, 3, axis=-1)
        ms_dt_bar = dt_cell * jax.nn.sigmoid(i_dt1 + h_dt1)
        ms_dt = dt_cell * jax.nn.sigmoid(i_dt2 + h_dt2)
        z = (1.0 - ms_dt) * z + ms_dt * jnp.tanh(i_y + h_y)
        y = (1.0 - ms_dt_bar) * y + ms_dt_bar * jnp.tanh(
            z @ params["w_tz"].T + params["b_tz"] + i_z)
        s = n_t @ params["w_st"].T + params["b_st"]
        if version == 0:
            s = jnp.tanh(s) * d_t
        elif version == 1:
            s = jnp.tanh(s * jnp.sqrt(d_t))
        elif version == 2:
            s = jnp.tanh(s)
        noise_y, noise_z = jnp.split(s, 2, axis=-1)
        y = y + ycoeff * noise_y
        z = z + zcoeff * noise_z
        return (y, z), y

    init = (jnp.zeros((B, nhid), jnp.float32), jnp.zeros((B, nhid), jnp.float32))
    _, ys = lax.scan(step, init, (inp, dt, noise))
    return ys @ params["w_cls"].T + params["b_cls"]


if __name__ == "__main__":
    T, B = 8, 8
    nfeat, ndt = 3, 1
    ninp = nfeat + ndt
    nhid, nout = 32, 2
    ycoeff, zcoeff = 0.1, 0.1

    key = jax.random.PRNGKey(0)
    k_inp, k_dt, k_noise, k_par = jax.random.split(key, 4)
    inp = jax.random.normal(k_inp, (T, B, nfeat), jnp.float32)
    dt = jax.random.uniform(k_dt, (T, B, ndt), jnp.float32, 0.01, 0.1)
    noise = jax.random.normal(k_noise, (T, B, 2 * nhid), jnp.float32)
    params = init_params(k_par, ninp, nhid, nout)

    out = lem_forward(inp, dt, noise, params,
                      ycoeff=ycoeff, zcoeff=zcoeff, version=0, dt_cell=1.0)
    out = jax.block_until_ready(out)

    ref = lem_forward_ref(inp, dt, noise, params,
                          ycoeff=ycoeff, zcoeff=zcoeff, version=0, dt_cell=1.0)
    assert out.shape == (T, B, nout)
    assert jnp.allclose(out, ref, atol=1e-4, rtol=1e-4), "mismatch vs reference"

    print("KERNEL_OK")
</pallas_src>

<mosaic_0001>
module attributes {stable_mosaic.version = 11 : i64} {
  func.func @_lem_kernel(%arg0: memref<64x4xf32, #tpu.memory_space<vmem>>, %arg1: memref<64x1xf32, #tpu.memory_space<vmem>>, %arg2: memref<64x64xf32, #tpu.memory_space<vmem>>, %arg3: memref<4x128xf32, #tpu.memory_space<vmem>>, %arg4: memref<1x128xf32, #tpu.memory_space<vmem>>, %arg5: memref<32x96xf32, #tpu.memory_space<vmem>>, %arg6: memref<32x32xf32, #tpu.memory_space<vmem>>, %arg7: memref<1x32xf32, #tpu.memory_space<vmem>>, %arg8: memref<64x64xf32, #tpu.memory_space<vmem>>, %arg9: memref<1x64xf32, #tpu.memory_space<vmem>>, %arg10: memref<32x2xf32, #tpu.memory_space<vmem>>, %arg11: memref<1x2xf32, #tpu.memory_space<vmem>>, %arg12: memref<64x2xf32, #tpu.memory_space<vmem>>, %arg13: memref<64x32xf32, #tpu.memory_space<vmem>>) attributes {dimension_semantics = [], scalar_prefetch = 0 : i64, scratch_operands = 1 : i64, tpu.core_type = #tpu.core_type<tc>} {
    %c0 = arith.constant 0 : index
    %c0_0 = arith.constant 0 : index
    %0 = vector.load %arg0[%c0, %c0_0] : memref<64x4xf32, #tpu.memory_space<vmem>>, vector<64x4xf32>
    %c0_1 = arith.constant 0 : index
    %c0_2 = arith.constant 0 : index
    %1 = vector.load %arg3[%c0_1, %c0_2] : memref<4x128xf32, #tpu.memory_space<vmem>>, vector<4x128xf32>
    %cst = arith.constant dense<0.000000e+00> : vector<64x128xf32>
    %2 = tpu.matmul %0, %1, %cst {dimension_numbers = #tpu.dot_dimension_numbers<[1], [0], [0], [1], [0, 0, 1, 1], [], []>} : vector<64x4xf32>, vector<4x128xf32>, vector<64x128xf32> -> vector<64x128xf32>
    %c0_3 = arith.constant 0 : index
    %c0_4 = arith.constant 0 : index
    %3 = vector.load %arg4[%c0_3, %c0_4] : memref<1x128xf32, #tpu.memory_space<vmem>>, vector<1x128xf32>
    %4 = vector.broadcast %3 : vector<1x128xf32> to vector<64x128xf32>
    %5 = arith.addf %2, %4 : vector<64x128xf32>
    %c0_5 = arith.constant 0 : index
    %c0_6 = arith.constant 0 : index
    %6 = vector.load %arg2[%c0_5, %c0_6] : memref<64x64xf32, #tpu.memory_space<vmem>>, vector<64x64xf32>
    %c0_7 = arith.constant 0 : index
    %c0_8 = arith.constant 0 : index
    %7 = vector.load %arg8[%c0_7, %c0_8] : memref<64x64xf32, #tpu.memory_space<vmem>>, vector<64x64xf32>
    %cst_9 = arith.constant dense<0.000000e+00> : vector<64x64xf32>
    %8 = tpu.matmul %6, %7, %cst_9 {dimension_numbers = #tpu.dot_dimension_numbers<[1], [0], [0], [1], [0, 0, 1, 1], [], []>} : vector<64x64xf32>, vector<64x64xf32>, vector<64x64xf32> -> vector<64x64xf32>
    %c0_10 = arith.constant 0 : index
    %c0_11 = arith.constant 0 : index
    %9 = vector.load %arg9[%c0_10, %c0_11] : memref<1x64xf32, #tpu.memory_space<vmem>>, vector<1x64xf32>
    %10 = vector.broadcast %9 : vector<1x64xf32> to vector<64x64xf32>
    %11 = arith.addf %8, %10 : vector<64x64xf32>
    %c0_12 = arith.constant 0 : index
    %c0_13 = arith.constant 0 : index
    %12 = vector.load %arg1[%c0_12, %c0_13] : memref<64x1xf32, #tpu.memory_space<vmem>>, vector<64x1xf32>
    %13 = math.tanh %11 : vector<64x64xf32>
    %14 = vector.broadcast %12 : vector<64x1xf32> to vector<64x64xf32>
    %15 = arith.mulf %13, %14 : vector<64x64xf32>
    %16 = vector.extract_strided_slice %15 {offsets = [0, 0], sizes = [64, 32], strides = [1, 1]} : vector<64x64xf32> to vector<64x32xf32>
    %cst_14 = arith.constant 1.000000e-01 : f32
    %17 = vector.broadcast %cst_14 : f32 to vector<64x32xf32>
    %18 = arith.mulf %17, %16 : vector<64x32xf32>
    %19 = vector.extract_strided_slice %15 {offsets = [0, 32], sizes = [64, 32], strides = [1, 1]} : vector<64x64xf32> to vector<64x32xf32>
    %cst_15 = arith.constant 1.000000e-01 : f32
    %20 = vector.broadcast %cst_15 : f32 to vector<64x32xf32>
    %21 = arith.mulf %20, %19 : vector<64x32xf32>
    %c0_16 = arith.constant 0 : index
    %c0_17 = arith.constant 0 : index
    %22 = vector.load %arg5[%c0_16, %c0_17] : memref<32x96xf32, #tpu.memory_space<vmem>>, vector<32x96xf32>
    %c0_18 = arith.constant 0 : index
    %c0_19 = arith.constant 0 : index
    %23 = vector.load %arg6[%c0_18, %c0_19] : memref<32x32xf32, #tpu.memory_space<vmem>>, vector<32x32xf32>
    %c0_20 = arith.constant 0 : index
    %c0_21 = arith.constant 0 : index
    %24 = vector.load %arg7[%c0_20, %c0_21] : memref<1x32xf32, #tpu.memory_space<vmem>>, vector<1x32xf32>
    %cst_22 = arith.constant 0.000000e+00 : f32
    %25 = vector.broadcast %cst_22 : f32 to vector<8x32xf32>
    %cst_23 = arith.constant 0.000000e+00 : f32
    %26 = vector.broadcast %cst_23 : f32 to vector<8x32xf32>
    %27 = vector.extract_strided_slice %5 {offsets = [0, 0], sizes = [8, 128], strides = [1, 1]} : vector<64x128xf32> to vector<8x128xf32>
    %cst_24 = arith.constant dense<0.000000e+00> : vector<8x96xf32>
    %28 = tpu.matmul %25, %22, %cst_24 {dimension_numbers = #tpu.dot_dimension_numbers<[1], [0], [0], [1], [0, 0, 1, 1], [], []>} : vector<8x32xf32>, vector<32x96xf32>, vector<8x96xf32> -> vector<8x96xf32>
    %29 = vector.extract_strided_slice %27 {offsets = [0, 0], sizes = [8, 32], strides = [1, 1]} : vector<8x128xf32> to vector<8x32xf32>
    %30 = vector.extract_strided_slice %28 {offsets = [0, 0], sizes = [8, 32], strides = [1, 1]} : vector<8x96xf32> to vector<8x32xf32>
    %31 = arith.addf %29, %30 : vector<8x32xf32>
    %32 = vector.extract_strided_slice %27 {offsets = [0, 32], sizes = [8, 32], strides = [1, 1]} : vector<8x128xf32> to vector<8x32xf32>
    %33 = vector.extract_strided_slice %28 {offsets = [0, 32], sizes = [8, 32], strides = [1, 1]} : vector<8x96xf32> to vector<8x32xf32>
    %34 = arith.addf %32, %33 : vector<8x32xf32>
    %35 = vector.extract_strided_slice %27 {offsets = [0, 64], sizes = [8, 32], strides = [1, 1]} : vector<8x128xf32> to vector<8x32xf32>
    %36 = vector.extract_strided_slice %28 {offsets = [0, 64], sizes = [8, 32], strides = [1, 1]} : vector<8x96xf32> to vector<8x32xf32>
    %37 = arith.addf %35, %36 : vector<8x32xf32>
    %38 = vector.extract_strided_slice %27 {offsets = [0, 96], sizes = [8, 32], strides = [1, 1]} : vector<8x128xf32> to vector<8x32xf32>
    %39 = arith.negf %31 : vector<8x32xf32>
    %40 = math.exp %39 : vector<8x32xf32>
    %cst_25 = arith.constant 1.000000e+00 : f32
    %41 = vector.broadcast %cst_25 : f32 to vector<8x32xf32>
    %42 = arith.addf %41, %40 : vector<8x32xf32>
    %43 = arith.divf %41, %42 : vector<8x32xf32>
    %cst_26 = arith.constant 1.000000e+00 : f32
    %44 = vector.broadcast %cst_26 : f32 to vector<8x32xf32>
    %45 = arith.mulf %44, %43 : vector<8x32xf32>
    %46 = arith.negf %34 : vector<8x32xf32>
    %47 = math.exp %46 : vector<8x32xf32>
    %cst_27 = arith.constant 1.000000e+00 : f32
    %48 = vector.broadcast %cst_27 : f32 to vector<8x32xf32>
    %49 = arith.addf %48, %47 : vector<8x32xf32>
    %50 = arith.divf %48, %49 : vector<8x32xf32>
    %cst_28 = arith.constant 1.000000e+00 : f32
    %51 = vector.broadcast %cst_28 : f32 to vector<8x32xf32>
    %52 = arith.mulf %51, %50 : vector<8x32xf32>
    %cst_29 = arith.constant 1.000000e+00 : f32
    %53 = vector.broadcast %cst_29 : f32 to vector<8x32xf32>
    %54 = arith.subf %53, %52 : vector<8x32xf32>
    %55 = arith.mulf %54, %26 : vector<8x32xf32>
    %56 = math.tanh %37 : vector<8x32xf32>
    %57 = arith.mulf %52, %56 : vector<8x32xf32>
    %58 = arith.addf %55, %57 : vector<8x32xf32>
    %cst_30 = arith.constant 1.000000e+00 : f32
    %59 = vector.broadcast %cst_30 : f32 to vector<8x32xf32>
    %60 = arith.subf %59, %45 : vector<8x32xf32>
    %61 = arith.mulf %60, %25 : vector<8x32xf32>
    %cst_31 = arith.constant dense<0.000000e+00> : vector<8x32xf32>
    %62 = tpu.matmul %58, %23, %cst_31 {dimension_numbers = #tpu.dot_dimension_numbers<[1], [0], [0], [1], [0, 0, 1, 1], [], []>} : vector<8x32xf32>, vector<32x32xf32>, vector<8x32xf32> -> vector<8x32xf32>
    %63 = vector.broadcast %24 : vector<1x32xf32> to vector<8x32xf32>
    %64 = arith.addf %62, %63 : vector<8x32xf32>
    %65 = arith.addf %64, %38 : vector<8x32xf32>
    %66 = math.tanh %65 : vector<8x32xf32>
    %67 = arith.mulf %45, %66 : vector<8x32xf32>
    %68 = arith.addf %61, %67 : vector<8x32xf32>
    %69 = vector.extract_strided_slice %18 {offsets = [0, 0], sizes = [8, 32], strides = [1, 1]} : vector<64x32xf32> to vector<8x32xf32>
    %70 = arith.addf %68, %69 : vector<8x32xf32>
    %71 = vector.extract_strided_slice %21 {offsets = [0, 0], sizes = [8, 32], strides = [1, 1]} : vector<64x32xf32> to vector<8x32xf32>
    %72 = arith.addf %58, %71 : vector<8x32xf32>
    %c0_32 = arith.constant 0 : index
    %c0_33 = arith.constant 0 : index
    %73 = vector.load %arg13[%c0_32, %c0_33] : memref<64x32xf32, #tpu.memory_space<vmem>>, vector<8x32xf32>
    tpu.vector_store %arg13[%c0_32, %c0_33], %70 {strides = array<i32>} : memref<64x32xf32, #tpu.memory_space<vmem>>, vector<8x32xf32>,
    %74 = vector.extract_strided_slice %5 {offsets = [8, 0], sizes = [8, 128], strides = [1, 1]} : vector<64x128xf32> to vector<8x128xf32>
    %cst_34 = arith.constant dense<0.000000e+00> : vector<8x96xf32>
    %75 = tpu.matmul %70, %22, %cst_34 {dimension_numbers = #tpu.dot_dimension_numbers<[1], [0], [0], [1], [0, 0, 1, 1], [], []>} : vector<8x32xf32>, vector<32x96xf32>, vector<8x96xf32> -> vector<8x96xf32>
    %76 = vector.extract_strided_slice %74 {offsets = [0, 0], sizes = [8, 32], strides = [1, 1]} : vector<8x128xf32> to vector<8x32xf32>
    %77 = vector.extract_strided_slice %75 {offsets = [0, 0], sizes = [8, 32], strides = [1, 1]} : vector<8x96xf32> to vector<8x32xf32>
    %78 = arith.addf %76, %77 : vector<8x32xf32>
    %79 = vector.extract_strided_slice %74 {offsets = [0, 32], sizes = [8, 32], strides = [1, 1]} : vector<8x128xf32> to vector<8x32xf32>
    %80 = vector.extract_strided_slice %75 {offsets = [0, 32], sizes = [8, 32], strides = [1, 1]} : vector<8x96xf32> to vector<8x32xf32>
    %81 = arith.addf %79, %80 : vector<8x32xf32>
    %82 = vector.extract_strided_slice %74 {offsets = [0, 64], sizes = [8, 32], strides = [1, 1]} : vector<8x128xf32> to vector<8x32xf32>
    %83 = vector.extract_strided_slice %75 {offsets = [0, 64], sizes = [8, 32], strides = [1, 1]} : vector<8x96xf32> to vector<8x32xf32>
    %84 = arith.addf %82, %83 : vector<8x32xf32>
    %85 = vector.extract_strided_slice %74 {offsets = [0, 96], sizes = [8, 32], strides = [1, 1]} : vector<8x128xf32> to vector<8x32xf32>
    %86 = arith.negf %78 : vector<8x32xf32>
    %87 = math.exp %86 : vector<8x32xf32>
    %cst_35 = arith.constant 1.000000e+00 : f32
    %88 = vector.broadcast %cst_35 : f32 to vector<8x32xf32>
    %89 = arith.addf %88, %87 : vector<8x32xf32>
    %90 = arith.divf %88, %89 : vector<8x32xf32>
    %cst_36 = arith.constant 1.000000e+00 : f32
    %91 = vector.broadcast %cst_36 : f32 to vector<8x32xf32>
    %92 = arith.mulf %91, %90 : vector<8x32xf32>
    %93 = arith.negf %81 : vector<8x32xf32>
    %94 = math.exp %93 : vector<8x32xf32>
    %cst_37 = arith.constant 1.000000e+00 : f32
    %95 = vector.broadcast %cst_37 : f32 to vector<8x32xf32>
    %96 = arith.addf %95, %94 : vector<8x32xf32>
    %97 = arith.divf %95, %96 : vector<8x32xf32>
    %cst_38 = arith.constant 1.000000e+00 : f32
    %98 = vector.broadcast %cst_38 : f32 to vector<8x32xf32>
    %99 = arith.mulf %98, %97 : vector<8x32xf32>
    %cst_39 = arith.constant 1.000000e+00 : f32
    %100 = vector.broadcast %cst_39 : f32 to vector<8x32xf32>
    %101 = arith.subf %100, %99 : vector<8x32xf32>
    %102 = arith.mulf %101, %72 : vector<8x32xf32>
    %103 = math.tanh %84 : vector<8x32xf32>
    %104 = arith.mulf %99, %103 : vector<8x32xf32>
    %105 = arith.addf %102, %104 : vector<8x32xf32>
    %cst_40 = arith.constant 1.000000e+00 : f32
    %106 = vector.broadcast %cst_40 : f32 to vector<8x32xf32>
    %107 = arith.subf %106, %92 : vector<8x32xf32>
    %108 = arith.mulf %107, %70 : vector<8x32xf32>
    %cst_41 = arith.constant dense<0.000000e+00> : vector<8x32xf32>
    %109 = tpu.matmul %105, %23, %cst_41 {dimension_numbers = #tpu.dot_dimension_numbers<[1], [0], [0], [1], [0, 0, 1, 1], [], []>} : vector<8x32xf32>, vector<32x32xf32>, vector<8x32xf32> -> vector<8x32xf32>
    %110 = vector.broadcast %24 : vector<1x32xf32> to vector<8x32xf32>
    %111 = arith.addf %109, %110 : vector<8x32xf32>
    %112 = arith.addf %111, %85 : vector<8x32xf32>
    %113 = math.tanh %112 : vector<8x32xf32>
    %114 = arith.mulf %92, %113 : vector<8x32xf32>
    %115 = arith.addf %108, %114 : vector<8x32xf32>
    %116 = vector.extract_strided_slice %18 {offsets = [8, 0], sizes = [8, 32], strides = [1, 1]} : vector<64x32xf32> to vector<8x32xf32>
    %117 = arith.addf %115, %116 : vector<8x32xf32>
    %118 = vector.extract_strided_slice %21 {offsets = [8, 0], sizes = [8, 32], strides = [1, 1]} : vector<64x32xf32> to vector<8x32xf32>
    %119 = arith.addf %105, %118 : vector<8x32xf32>
    %c8 = arith.constant 8 : index
    %c0_42 = arith.constant 0 : index
    %120 = vector.load %arg13[%c8, %c0_42] : memref<64x32xf32, #tpu.memory_space<vmem>>, vector<8x32xf32>
    tpu.vector_store %arg13[%c8, %c0_42], %117 {strides = array<i32>} : memref<64x32xf32, #tpu.memory_space<vmem>>, vector<8x32xf32>,
    %121 = vector.extract_strided_slice %5 {offsets = [16, 0], sizes = [8, 128], strides = [1, 1]} : vector<64x128xf32> to vector<8x128xf32>
    %cst_43 = arith.constant dense<0.000000e+00> : vector<8x96xf32>
    %122 = tpu.matmul %117, %22, %cst_43 {dimension_numbers = #tpu.dot_dimension_numbers<[1], [0], [0], [1], [0, 0, 1, 1], [], []>} : vector<8x32xf32>, vector<32x96xf32>, vector<8x96xf32> -> vector<8x96xf32>
    %123 = vector.extract_strided_slice %121 {offsets = [0, 0], sizes = [8, 32], strides = [1, 1]} : vector<8x128xf32> to vector<8x32xf32>
    %124 = vector.extract_strided_slice %122 {offsets = [0, 0], sizes = [8, 32], strides = [1, 1]} : vector<8x96xf32> to vector<8x32xf32>
    %125 = arith.addf %123, %124 : vector<8x32xf32>
    %126 = vector.extract_strided_slice %121 {offsets = [0, 32], sizes = [8, 32], strides = [1, 1]} : vector<8x128xf32> to vector<8x32xf32>
    %127 = vector.extract_strided_slice %122 {offsets = [0, 32], sizes = [8, 32], strides = [1, 1]} : vector<8x96xf32> to vector<8x32xf32>
    %128 = arith.addf %126, %127 : vector<8x32xf32>
    %129 = vector.extract_strided_slice %121 {offsets = [0, 64], sizes = [8, 32], strides = [1, 1]} : vector<8x128xf32> to vector<8x32xf32>
    %130 = vector.extract_strided_slice %122 {offsets = [0, 64], sizes = [8, 32], strides = [1, 1]} : vector<8x96xf32> to vector<8x32xf32>
    %131 = arith.addf %129, %130 : vector<8x32xf32>
    %132 = vector.extract_strided_slice %121 {offsets = [0, 96], sizes = [8, 32], strides = [1, 1]} : vector<8x128xf32> to vector<8x32xf32>
    %133 = arith.negf %125 : vector<8x32xf32>
    %134 = math.exp %133 : vector<8x32xf32>
    %cst_44 = arith.constant 1.000000e+00 : f32
    %135 = vector.broadcast %cst_44 : f32 to vector<8x32xf32>
    %136 = arith.addf %135, %134 : vector<8x32xf32>
    %137 = arith.divf %135, %136 : vector<8x32xf32>
    %cst_45 = arith.constant 1.000000e+00 : f32
    %138 = vector.broadcast %cst_45 : f32 to vector<8x32xf32>
    %139 = arith.mulf %138, %137 : vector<8x32xf32>
    %140 = arith.negf %128 : vector<8x32xf32>
    %141 = math.exp %140 : vector<8x32xf32>
    %cst_46 = arith.constant 1.000000e+00 : f32
    %142 = vector.broadcast %cst_46 : f32 to vector<8x32xf32>
    %143 = arith.addf %142, %141 : vector<8x32xf32>
    %144 = arith.divf %142, %143 : vector<8x32xf32>
    %cst_47 = arith.constant 1.000000e+00 : f32
    %145 = vector.broadcast %cst_47 : f32 to vector<8x32xf32>
    %146 = arith.mulf %145, %144 : vector<8x32xf32>
    %cst_48 = arith.constant 1.000000e+00 : f32
    %147 = vector.broadcast %cst_48 : f32 to vector<8x32xf32>
    %148 = arith.subf %147, %146 : vector<8x32xf32>
    %149 = arith.mulf %148, %119 : vector<8x32xf32>
    %150 = math.tanh %131 : vector<8x32xf32>
    %151 = arith.mulf %146, %150 : vector<8x32xf32>
    %152 = arith.addf %149, %151 : vector<8x32xf32>
    %cst_49 = arith.constant 1.000000e+00 : f32
    %153 = vector.broadcast %cst_49 : f32 to vector<8x32xf32>
    %154 = arith.subf %153, %139 : vector<8x32xf32>
    %155 = arith.mulf %154, %117 : vector<8x32xf32>
    %cst_50 = arith.constant dense<0.000000e+00> : vector<8x32xf32>
    %156 = tpu.matmul %152, %23, %cst_50 {dimension_numbers = #tpu.dot_dimension_numbers<[1], [0], [0], [1], [0, 0, 1, 1], [], []>} : vector<8x32xf32>, vector<32x32xf32>, vector<8x32xf32> -> vector<8x32xf32>
    %157 = vector.broadcast %24 : vector<1x32xf32> to vector<8x32xf32>
    %158 = arith.addf %156, %157 : vector<8x32xf32>
    %159 = arith.addf %158, %132 : vector<8x32xf32>
    %160 = math.tanh %159 : vector<8x32xf32>
    %161 = arith.mulf %139, %160 : vector<8x32xf32>
    %162 = arith.addf %155, %161 : vector<8x32xf32>
    %163 = vector.extract_strided_slice %18 {offsets = [16, 0], sizes = [8, 32], strides = [1, 1]} : vector<64x32xf32> to vector<8x32xf32>
    %164 = arith.addf %162, %163 : vector<8x32xf32>
    %165 = vector.extract_strided_slice %21 {offsets = [16, 0], sizes = [8, 32], strides = [1, 1]} : vector<64x32xf32> to vector<8x32xf32>
    %166 = arith.addf %152, %165 : vector<8x32xf32>
    %c16 = arith.constant 16 : index
    %c0_51 = arith.constant 0 : index
    %167 = vector.load %arg13[%c16, %c0_51] : memref<64x32xf32, #tpu.memory_space<vmem>>, vector<8x32xf32>
    tpu.vector_store %arg13[%c16, %c0_51], %164 {strides = array<i32>} : memref<64x32xf32, #tpu.memory_space<vmem>>, vector<8x32xf32>,
    %168 = vector.extract_strided_slice %5 {offsets = [24, 0], sizes = [8, 128], strides = [1, 1]} : vector<64x128xf32> to vector<8x128xf32>
    %cst_52 = arith.constant dense<0.000000e+00> : vector<8x96xf32>
    %169 = tpu.matmul %164, %22, %cst_52 {dimension_numbers = #tpu.dot_dimension_numbers<[1], [0], [0], [1], [0, 0, 1, 1], [], []>} : vector<8x32xf32>, vector<32x96xf32>, vector<8x96xf32> -> vector<8x96xf32>
    %170 = vector.extract_strided_slice %168 {offsets = [0, 0], sizes = [8, 32], strides = [1, 1]} : vector<8x128xf32> to vector<8x32xf32>
    %171 = vector.extract_strided_slice %169 {offsets = [0, 0], sizes = [8, 32], strides = [1, 1]} : vector<8x96xf32> to vector<8x32xf32>
    %172 = arith.addf %170, %171 : vector<8x32xf32>
    %173 = vector.extract_strided_slice %168 {offsets = [0, 32], sizes = [8, 32], strides = [1, 1]} : vector<8x128xf32> to vector<8x32xf32>
    %174 = vector.extract_strided_slice %169 {offsets = [0, 32], sizes = [8, 32], strides = [1, 1]} : vector<8x96xf32> to vector<8x32xf32>
    %175 = arith.addf %173, %174 : vector<8x32xf32>
    %176 = vector.extract_strided_slice %168 {offsets = [0, 64], sizes = [8, 32], strides = [1, 1]} : vector<8x128xf32> to vector<8x32xf32>
    %177 = vector.extract_strided_slice %169 {offsets = [0, 64], sizes = [8, 32], strides = [1, 1]} : vector<8x96xf32> to vector<8x32xf32>
    %178 = arith.addf %176, %177 : vector<8x32xf32>
    %179 = vector.extract_strided_slice %168 {offsets = [0, 96], sizes = [8, 32], strides = [1, 1]} : vector<8x128xf32> to vector<8x32xf32>
    %180 = arith.negf %172 : vector<8x32xf32>
    %181 = math.exp %180 : vector<8x32xf32>
    %cst_53 = arith.constant 1.000000e+00 : f32
    %182 = vector.broadcast %cst_53 : f32 to vector<8x32xf32>
    %183 = arith.addf %182, %181 : vector<8x32xf32>
    %184 = arith.divf %182, %183 : vector<8x32xf32>
    %cst_54 = arith.constant 1.000000e+00 : f32
    %185 = vector.broadcast %cst_54 : f32 to vector<8x32xf32>
    %186 = arith.mulf %185, %184 : vector<8x32xf32>
    %187 = arith.negf %175 : vector<8x32xf32>
    %188 = math.exp %187 : vector<8x32xf32>
    %cst_55 = arith.constant 1.000000e+00 : f32
    %189 = vector.broadcast %cst_55 : f32 to vector<8x32xf32>
    %190 = arith.addf %189, %188 : vector<8x32xf32>
    %191 = arith.divf %189, %190 : vector<8x32xf32>
    %cst_56 = arith.constant 1.000000e+00 : f32
    %192 = vector.broadcast %cst_56 : f32 to vector<8x32xf32>
    %193 = arith.mulf %192, %191 : vector<8x32xf32>
    %cst_57 = arith.constant 1.000000e+00 : f32
    %194 = vector.broadcast %cst_57 : f32 to vector<8x32xf32>
    %195 = arith.subf %194, %193 : vector<8x32xf32>
    %196 = arith.mulf %195, %166 : vector<8x32xf32>
    %197 = math.tanh %178 : vector<8x32xf32>
    %198 = arith.mulf %193, %197 : vector<8x32xf32>
    %199 = arith.addf %196, %198 : vector<8x32xf32>
    %cst_58 = arith.constant 1.000000e+00 : f32
    %200 = vector.broadcast %cst_58 : f32 to vector<8x32xf32>
    %201 = arith.subf %200, %186 : vector<8x32xf32>
    %202 = arith.mulf %201, %164 : vector<8x32xf32>
    %cst_59 = arith.constant dense<0.000000e+00> : vector<8x32xf32>
    %203 = tpu.matmul %199, %23, %cst_59 {dimension_numbers = #tpu.dot_dimension_numbers<[1], [0], [0], [1], [0, 0, 1, 1], [], []>} : vector<8x32xf32>, vector<32x32xf32>, vector<8x32xf32> -> vector<8x32xf32>
    %204 = vector.broadcast %24 : vector<1x32xf32> to vector<8x32xf32>
    %205 = arith.addf %203, %204 : vector<8x32xf32>
    %206 = arith.addf %205, %179 : vector<8x32xf32>
    %207 = math.tanh %206 : vector<8x32xf32>
    %208 = arith.mulf %186, %207 : vector<8x32xf32>
    %209 = arith.addf %202, %208 : vector<8x32xf32>
    %210 = vector.extract_strided_slice %18 {offsets = [24, 0], sizes = [8, 32], strides = [1, 1]} : vector<64x32xf32> to vector<8x32xf32>
    %211 = arith.addf %209, %210 : vector<8x32xf32>
    %212 = vector.extract_strided_slice %21 {offsets = [24, 0], sizes = [8, 32], strides = [1, 1]} : vector<64x32xf32> to vector<8x32xf32>
    %213 = arith.addf %199, %212 : vector<8x32xf32>
    %c24 = arith.constant 24 : index
    %c0_60 = arith.constant 0 : index
    %214 = vector.load %arg13[%c24, %c0_60] : memref<64x32xf32, #tpu.memory_space<vmem>>, vector<8x32xf32>
    tpu.vector_store %arg13[%c24, %c0_60], %211 {strides = array<i32>} : memref<64x32xf32, #tpu.memory_space<vmem>>, vector<8x32xf32>,
    %215 = vector.extract_strided_slice %5 {offsets = [32, 0], sizes = [8, 128], strides = [1, 1]} : vector<64x128xf32> to vector<8x128xf32>
    %cst_61 = arith.constant dense<0.000000e+00> : vector<8x96xf32>
    %216 = tpu.matmul %211, %22, %cst_61 {dimension_numbers = #tpu.dot_dimension_numbers<[1], [0], [0], [1], [0, 0, 1, 1], [], []>} : vector<8x32xf32>, vector<32x96xf32>, vector<8x96xf32> -> vector<8x96xf32>
    %217 = vector.extract_strided_slice %215 {offsets = [0, 0], sizes = [8, 32], strides = [1, 1]} : vector<8x128xf32> to vector<8x32xf32>
    %218 = vector.extract_strided_slice %216 {offsets = [0, 0], sizes = [8, 32], strides = [1, 1]} : vector<8x96xf32> to vector<8x32xf32>
    %219 = arith.addf %217, %218 : vector<8x32xf32>
    %220 = vector.extract_strided_slice %215 {offsets = [0, 32], sizes = [8, 32], strides = [1, 1]} : vector<8x128xf32> to vector<8x32xf32>
    %221 = vector.extract_strided_slice %216 {offsets = [0, 32], sizes = [8, 32], strides = [1, 1]} : vector<8x96xf32> to vector<8x32xf32>
    %222 = arith.addf %220, %221 : vector<8x32xf32>
    %223 = vector.extract_strided_slice %215 {offsets = [0, 64], sizes = [8, 32], strides = [1, 1]} : vector<8x128xf32> to vector<8x32xf32>
    %224 = vector.extract_strided_slice %216 {offsets = [0, 64], sizes = [8, 32], strides = [1, 1]} : vector<8x96xf32> to vector<8x32xf32>
    %225 = arith.addf %223, %224 : vector<8x32xf32>
    %226 = vector.extract_strided_slice %215 {offsets = [0, 96], sizes = [8, 32], strides = [1, 1]} : vector<8x128xf32> to vector<8x32xf32>
    %227 = arith.negf %219 : vector<8x32xf32>
    %228 = math.exp %227 : vector<8x32xf32>
    %cst_62 = arith.constant 1.000000e+00 : f32
    %229 = vector.broadcast %cst_62 : f32 to vector<8x32xf32>
    %230 = arith.addf %229, %228 : vector<8x32xf32>
    %231 = arith.divf %229, %230 : vector<8x32xf32>
    %cst_63 = arith.constant 1.000000e+00 : f32
    %232 = vector.broadcast %cst_63 : f32 to vector<8x32xf32>
    %233 = arith.mulf %232, %231 : vector<8x32xf32>
    %234 = arith.negf %222 : vector<8x32xf32>
    %235 = math.exp %234 : vector<8x32xf32>
    %cst_64 = arith.constant 1.000000e+00 : f32
    %236 = vector.broadcast %cst_64 : f32 to vector<8x32xf32>
    %237 = arith.addf %236, %235 : vector<8x32xf32>
    %238 = arith.divf %236, %237 : vector<8x32xf32>
    %cst_65 = arith.constant 1.000000e+00 : f32
    %239 = vector.broadcast %cst_65 : f32 to vector<8x32xf32>
    %240 = arith.mulf %239, %238 : vector<8x32xf32>
    %cst_66 = arith.constant 1.000000e+00 : f32
    %241 = vector.broadcast %cst_66 : f32 to vector<8x32xf32>
    %242 = arith.subf %241, %240 : vector<8x32xf32>
    %243 = arith.mulf %242, %213 : vector<8x32xf32>
    %244 = math.tanh %225 : vector<8x32xf32>
    %245 = arith.mulf %240, %244 : vector<8x32xf32>
    %246 = arith.addf %243, %245 : vector<8x32xf32>
    %cst_67 = arith.constant 1.000000e+00 : f32
    %247 = vector.broadcast %cst_67 : f32 to vector<8x32xf32>
    %248 = arith.subf %247, %233 : vector<8x32xf32>
    %249 = arith.mulf %248, %211 : vector<8x32xf32>
    %cst_68 = arith.constant dense<0.000000e+00> : vector<8x32xf32>
    %250 = tpu.matmul %246, %23, %cst_68 {dimension_numbers = #tpu.dot_dimension_numbers<[1], [0], [0], [1], [0, 0, 1, 1], [], []>} : vector<8x32xf32>, vector<32x32xf32>, vector<8x32xf32> -> vector<8x32xf32>
    %251 = vector.broadcast %24 : vector<1x32xf32> to vector<8x32xf32>
    %252 = arith.addf %250, %251 : vector<8x32xf32>
    %253 = arith.addf %252, %226 : vector<8x32xf32>
    %254 = math.tanh %253 : vector<8x32xf32>
    %255 = arith.mulf %233, %254 : vector<8x32xf32>
    %256 = arith.addf %249, %255 : vector<8x32xf32>
    %257 = vector.extract_strided_slice %18 {offsets = [32, 0], sizes = [8, 32], strides = [1, 1]} : vector<64x32xf32> to vector<8x32xf32>
    %258 = arith.addf %256, %257 : vector<8x32xf32>
    %259 = vector.extract_strided_slice %21 {offsets = [32, 0], sizes = [8, 32], strides = [1, 1]} : vector<64x32xf32> to vector<8x32xf32>
    %260 = arith.addf %246, %259 : vector<8x32xf32>
    %c32 = arith.constant 32 : index
    %c0_69 = arith.constant 0 : index
    %261 = vector.load %arg13[%c32, %c0_69] : memref<64x32xf32, #tpu.memory_space<vmem>>, vector<8x32xf32>
    tpu.vector_store %arg13[%c32, %c0_69], %258 {strides = array<i32>} : memref<64x32xf32, #tpu.memory_space<vmem>>, vector<8x32xf32>,
    %262 = vector.extract_strided_slice %5 {offsets = [40, 0], sizes = [8, 128], strides = [1, 1]} : vector<64x128xf32> to vector<8x128xf32>
    %cst_70 = arith.constant dense<0.000000e+00> : vector<8x96xf32>
    %263 = tpu.matmul %258, %22, %cst_70 {dimension_numbers = #tpu.dot_dimension_numbers<[1], [0], [0], [1], [0, 0, 1, 1], [], []>} : vector<8x32xf32>, vector<32x96xf32>, vector<8x96xf32> -> vector<8x96xf32>
    %264 = vector.extract_strided_slice %262 {offsets = [0, 0], sizes = [8, 32], strides = [1, 1]} : vector<8x128xf32> to vector<8x32xf32>
    %265 = vector.extract_strided_slice %263 {offsets = [0, 0], sizes = [8, 32], strides = [1, 1]} : vector<8x96xf32> to vector<8x32xf32>
    %266 = arith.addf %264, %265 : vector<8x32xf32>
    %267 = vector.extract_strided_slice %262 {offsets = [0, 32], sizes = [8, 32], strides = [1, 1]} : vector<8x128xf32> to vector<8x32xf32>
    %268 = vector.extract_strided_slice %263 {offsets = [0, 32], sizes = [8, 32], strides = [1, 1]} : vector<8x96xf32> to vector<8x32xf32>
    %269 = arith.addf %267, %268 : vector<8x32xf32>
    %270 = vector.extract_strided_slice %262 {offsets = [0, 64], sizes = [8, 32], strides = [1, 1]} : vector<8x128xf32> to vector<8x32xf32>
    %271 = vector.extract_strided_slice %263 {offsets = [0, 64], sizes = [8, 32], strides = [1, 1]} : vector<8x96xf32> to vector<8x32xf32>
    %272 = arith.addf %270, %271 : vector<8x32xf32>
    %273 = vector.extract_strided_slice %262 {offsets = [0, 96], sizes = [8, 32], strides = [1, 1]} : vector<8x128xf32> to vector<8x32xf32>
    %274 = arith.negf %266 : vector<8x32xf32>
    %275 = math.exp %274 : vector<8x32xf32>
    %cst_71 = arith.constant 1.000000e+00 : f32
    %276 = vector.broadcast %cst_71 : f32 to vector<8x32xf32>
    %277 = arith.addf %276, %275 : vector<8x32xf32>
    %278 = arith.divf %276, %277 : vector<8x32xf32>
    %cst_72 = arith.constant 1.000000e+00 : f32
    %279 = vector.broadcast %cst_72 : f32 to vector<8x32xf32>
    %280 = arith.mulf %279, %278 : vector<8x32xf32>
    %281 = arith.negf %269 : vector<8x32xf32>
    %282 = math.exp %281 : vector<8x32xf32>
    %cst_73 = arith.constant 1.000000e+00 : f32
    %283 = vector.broadcast %cst_73 : f32 to vector<8x32xf32>
    %284 = arith.addf %283, %282 : vector<8x32xf32>
    %285 = arith.divf %283, %284 : vector<8x32xf32>
    %cst_74 = arith.constant 1.000000e+00 : f32
    %286 = vector.broadcast %cst_74 : f32 to vector<8x32xf32>
    %287 = arith.mulf %286, %285 : vector<8x32xf32>
    %cst_75 = arith.constant 1.000000e+00 : f32
    %288 = vector.broadcast %cst_75 : f32 to vector<8x32xf32>
    %289 = arith.subf %288, %287 : vector<8x32xf32>
    %290 = arith.mulf %289, %260 : vector<8x32xf32>
    %291 = math.tanh %272 : vector<8x32xf32>
    %292 = arith.mulf %287, %291 : vector<8x32xf32>
    %293 = arith.addf %290, %292 : vector<8x32xf32>
    %cst_76 = arith.constant 1.000000e+00 : f32
    %294 = vector.broadcast %cst_76 : f32 to vector<8x32xf32>
    %295 = arith.subf %294, %280 : vector<8x32xf32>
    %296 = arith.mulf %295, %258 : vector<8x32xf32>
    %cst_77 = arith.constant dense<0.000000e+00> : vector<8x32xf32>
    %297 = tpu.matmul %293, %23, %cst_77 {dimension_numbers = #tpu.dot_dimension_numbers<[1], [0], [0], [1], [0, 0, 1, 1], [], []>} : vector<8x32xf32>, vector<32x32xf32>, vector<8x32xf32> -> vector<8x32xf32>
    %298 = vector.broadcast %24 : vector<1x32xf32> to vector<8x32xf32>
    %299 = arith.addf %297, %298 : vector<8x32xf32>
    %300 = arith.addf %299, %273 : vector<8x32xf32>
    %301 = math.tanh %300 : vector<8x32xf32>
    %302 = arith.mulf %280, %301 : vector<8x32xf32>
    %303 = arith.addf %296, %302 : vector<8x32xf32>
    %304 = vector.extract_strided_slice %18 {offsets = [40, 0], sizes = [8, 32], strides = [1, 1]} : vector<64x32xf32> to vector<8x32xf32>
    %305 = arith.addf %303, %304 : vector<8x32xf32>
    %306 = vector.extract_strided_slice %21 {offsets = [40, 0], sizes = [8, 32], strides = [1, 1]} : vector<64x32xf32> to vector<8x32xf32>
    %307 = arith.addf %293, %306 : vector<8x32xf32>
    %c40 = arith.constant 40 : index
    %c0_78 = arith.constant 0 : index
    %308 = vector.load %arg13[%c40, %c0_78] : memref<64x32xf32, #tpu.memory_space<vmem>>, vector<8x32xf32>
    tpu.vector_store %arg13[%c40, %c0_78], %305 {strides = array<i32>} : memref<64x32xf32, #tpu.memory_space<vmem>>, vector<8x32xf32>,
    %309 = vector.extract_strided_slice %5 {offsets = [48, 0], sizes = [8, 128], strides = [1, 1]} : vector<64x128xf32> to vector<8x128xf32>
    %cst_79 = arith.constant dense<0.000000e+00> : vector<8x96xf32>
    %310 = tpu.matmul %305, %22, %cst_79 {dimension_numbers = #tpu.dot_dimension_numbers<[1], [0], [0], [1], [0, 0, 1, 1], [], []>} : vector<8x32xf32>, vector<32x96xf32>, vector<8x96xf32> -> vector<8x96xf32>
    %311 = vector.extract_strided_slice %309 {offsets = [0, 0], sizes = [8, 32], strides = [1, 1]} : vector<8x128xf32> to vector<8x32xf32>
    %312 = vector.extract_strided_slice %310 {offsets = [0, 0], sizes = [8, 32], strides = [1, 1]} : vector<8x96xf32> to vector<8x32xf32>
    %313 = arith.addf %311, %312 : vector<8x32xf32>
    %314 = vector.extract_strided_slice %309 {offsets = [0, 32], sizes = [8, 32], strides = [1, 1]} : vector<8x128xf32> to vector<8x32xf32>
    %315 = vector.extract_strided_slice %310 {offsets = [0, 32], sizes = [8, 32], strides = [1, 1]} : vector<8x96xf32> to vector<8x32xf32>
    %316 = arith.addf %314, %315 : vector<8x32xf32>
    %317 = vector.extract_strided_slice %309 {offsets = [0, 64], sizes = [8, 32], strides = [1, 1]} : vector<8x128xf32> to vector<8x32xf32>
    %318 = vector.extract_strided_slice %310 {offsets = [0, 64], sizes = [8, 32], strides = [1, 1]} : vector<8x96xf32> to vector<8x32xf32>
    %319 = arith.addf %317, %318 : vector<8x32xf32>
    %320 = vector.extract_strided_slice %309 {offsets = [0, 96], sizes = [8, 32], strides = [1, 1]} : vector<8x128xf32> to vector<8x32xf32>
    %321 = arith.negf %313 : vector<8x32xf32>
    %322 = math.exp %321 : vector<8x32xf32>
    %cst_80 = arith.constant 1.000000e+00 : f32
    %323 = vector.broadcast %cst_80 : f32 to vector<8x32xf32>
    %324 = arith.addf %323, %322 : vector<8x32xf32>
    %325 = arith.divf %323, %324 : vector<8x32xf32>
    %cst_81 = arith.constant 1.000000e+00 : f32
    %326 = vector.broadcast %cst_81 : f32 to vector<8x32xf32>
    %327 = arith.mulf %326, %325 : vector<8x32xf32>
    %328 = arith.negf %316 : vector<8x32xf32>
    %329 = math.exp %328 : vector<8x32xf32>
    %cst_82 = arith.constant 1.000000e+00 : f32
    %330 = vector.broadcast %cst_82 : f32 to vector<8x32xf32>
    %331 = arith.addf %330, %329 : vector<8x32xf32>
    %332 = arith.divf %330, %331 : vector<8x32xf32>
    %cst_83 = arith.constant 1.000000e+00 : f32
    %333 = vector.broadcast %cst_83 : f32 to vector<8x32xf32>
    %334 = arith.mulf %333, %332 : vector<8x32xf32>
    %cst_84 = arith.constant 1.000000e+00 : f32
    %335 = vector.broadcast %cst_84 : f32 to vector<8x32xf32>
    %336 = arith.subf %335, %334 : vector<8x32xf32>
    %337 = arith.mulf %336, %307 : vector<8x32xf32>
    %338 = math.tanh %319 : vector<8x32xf32>
    %339 = arith.mulf %334, %338 : vector<8x32xf32>
    %340 = arith.addf %337, %339 : vector<8x32xf32>
    %cst_85 = arith.constant 1.000000e+00 : f32
    %341 = vector.broadcast %cst_85 : f32 to vector<8x32xf32>
    %342 = arith.subf %341, %327 : vector<8x32xf32>
    %343 = arith.mulf %342, %305 : vector<8x32xf32>
    %cst_86 = arith.constant dense<0.000000e+00> : vector<8x32xf32>
    %344 = tpu.matmul %340, %23, %cst_86 {dimension_numbers = #tpu.dot_dimension_numbers<[1], [0], [0], [1], [0, 0, 1, 1], [], []>} : vector<8x32xf32>, vector<32x32xf32>, vector<8x32xf32> -> vector<8x32xf32>
    %345 = vector.broadcast %24 : vector<1x32xf32> to vector<8x32xf32>
    %346 = arith.addf %344, %345 : vector<8x32xf32>
    %347 = arith.addf %346, %320 : vector<8x32xf32>
    %348 = math.tanh %347 : vector<8x32xf32>
    %349 = arith.mulf %327, %348 : vector<8x32xf32>
    %350 = arith.addf %343, %349 : vector<8x32xf32>
    %351 = vector.extract_strided_slice %18 {offsets = [48, 0], sizes = [8, 32], strides = [1, 1]} : vector<64x32xf32> to vector<8x32xf32>
    %352 = arith.addf %350, %351 : vector<8x32xf32>
    %353 = vector.extract_strided_slice %21 {offsets = [48, 0], sizes = [8, 32], strides = [1, 1]} : vector<64x32xf32> to vector<8x32xf32>
    %354 = arith.addf %340, %353 : vector<8x32xf32>
    %c48 = arith.constant 48 : index
    %c0_87 = arith.constant 0 : index
    %355 = vector.load %arg13[%c48, %c0_87] : memref<64x32xf32, #tpu.memory_space<vmem>>, vector<8x32xf32>
    tpu.vector_store %arg13[%c48, %c0_87], %352 {strides = array<i32>} : memref<64x32xf32, #tpu.memory_space<vmem>>, vector<8x32xf32>,
    %356 = vector.extract_strided_slice %5 {offsets = [56, 0], sizes = [8, 128], strides = [1, 1]} : vector<64x128xf32> to vector<8x128xf32>
    %cst_88 = arith.constant dense<0.000000e+00> : vector<8x96xf32>
    %357 = tpu.matmul %352, %22, %cst_88 {dimension_numbers = #tpu.dot_dimension_numbers<[1], [0], [0], [1], [0, 0, 1, 1], [], []>} : vector<8x32xf32>, vector<32x96xf32>, vector<8x96xf32> -> vector<8x96xf32>
    %358 = vector.extract_strided_slice %356 {offsets = [0, 0], sizes = [8, 32], strides = [1, 1]} : vector<8x128xf32> to vector<8x32xf32>
    %359 = vector.extract_strided_slice %357 {offsets = [0, 0], sizes = [8, 32], strides = [1, 1]} : vector<8x96xf32> to vector<8x32xf32>
    %360 = arith.addf %358, %359 : vector<8x32xf32>
    %361 = vector.extract_strided_slice %356 {offsets = [0, 32], sizes = [8, 32], strides = [1, 1]} : vector<8x128xf32> to vector<8x32xf32>
    %362 = vector.extract_strided_slice %357 {offsets = [0, 32], sizes = [8, 32], strides = [1, 1]} : vector<8x96xf32> to vector<8x32xf32>
    %363 = arith.addf %361, %362 : vector<8x32xf32>
    %364 = vector.extract_strided_slice %356 {offsets = [0, 64], sizes = [8, 32], strides = [1, 1]} : vector<8x128xf32> to vector<8x32xf32>
    %365 = vector.extract_strided_slice %357 {offsets = [0, 64], sizes = [8, 32], strides = [1, 1]} : vector<8x96xf32> to vector<8x32xf32>
    %366 = arith.addf %364, %365 : vector<8x32xf32>
    %367 = vector.extract_strided_slice %356 {offsets = [0, 96], sizes = [8, 32], strides = [1, 1]} : vector<8x128xf32> to vector<8x32xf32>
    %368 = arith.negf %360 : vector<8x32xf32>
    %369 = math.exp %368 : vector<8x32xf32>
    %cst_89 = arith.constant 1.000000e+00 : f32
    %370 = vector.broadcast %cst_89 : f32 to vector<8x32xf32>
    %371 = arith.addf %370, %369 : vector<8x32xf32>
    %372 = arith.divf %370, %371 : vector<8x32xf32>
    %cst_90 = arith.constant 1.000000e+00 : f32
    %373 = vector.broadcast %cst_90 : f32 to vector<8x32xf32>
    %374 = arith.mulf %373, %372 : vector<8x32xf32>
    %375 = arith.negf %363 : vector<8x32xf32>
    %376 = math.exp %375 : vector<8x32xf32>
    %cst_91 = arith.constant 1.000000e+00 : f32
    %377 = vector.broadcast %cst_91 : f32 to vector<8x32xf32>
    %378 = arith.addf %377, %376 : vector<8x32xf32>
    %379 = arith.divf %377, %378 : vector<8x32xf32>
    %cst_92 = arith.constant 1.000000e+00 : f32
    %380 = vector.broadcast %cst_92 : f32 to vector<8x32xf32>
    %381 = arith.mulf %380, %379 : vector<8x32xf32>
    %cst_93 = arith.constant 1.000000e+00 : f32
    %382 = vector.broadcast %cst_93 : f32 to vector<8x32xf32>
    %383 = arith.subf %382, %381 : vector<8x32xf32>
    %384 = arith.mulf %383, %354 : vector<8x32xf32>
    %385 = math.tanh %366 : vector<8x32xf32>
    %386 = arith.mulf %381, %385 : vector<8x32xf32>
    %387 = arith.addf %384, %386 : vector<8x32xf32>
    %cst_94 = arith.constant 1.000000e+00 : f32
    %388 = vector.broadcast %cst_94 : f32 to vector<8x32xf32>
    %389 = arith.subf %388, %374 : vector<8x32xf32>
    %390 = arith.mulf %389, %352 : vector<8x32xf32>
    %cst_95 = arith.constant dense<0.000000e+00> : vector<8x32xf32>
    %391 = tpu.matmul %387, %23, %cst_95 {dimension_numbers = #tpu.dot_dimension_numbers<[1], [0], [0], [1], [0, 0, 1, 1], [], []>} : vector<8x32xf32>, vector<32x32xf32>, vector<8x32xf32> -> vector<8x32xf32>
    %392 = vector.broadcast %24 : vector<1x32xf32> to vector<8x32xf32>
    %393 = arith.addf %391, %392 : vector<8x32xf32>
    %394 = arith.addf %393, %367 : vector<8x32xf32>
    %395 = math.tanh %394 : vector<8x32xf32>
    %396 = arith.mulf %374, %395 : vector<8x32xf32>
    %397 = arith.addf %390, %396 : vector<8x32xf32>
    %398 = vector.extract_strided_slice %18 {offsets = [56, 0], sizes = [8, 32], strides = [1, 1]} : vector<64x32xf32> to vector<8x32xf32>
    %399 = arith.addf %397, %398 : vector<8x32xf32>
    %c56 = arith.constant 56 : index
    %c0_96 = arith.constant 0 : index
    %400 = vector.load %arg13[%c56, %c0_96] : memref<64x32xf32, #tpu.memory_space<vmem>>, vector<8x32xf32>
    tpu.vector_store %arg13[%c56, %c0_96], %399 {strides = array<i32>} : memref<64x32xf32, #tpu.memory_space<vmem>>, vector<8x32xf32>,
    %c0_97 = arith.constant 0 : index
    %c0_98 = arith.constant 0 : index
    %401 = vector.load %arg13[%c0_97, %c0_98] : memref<64x32xf32, #tpu.memory_space<vmem>>, vector<64x32xf32>
    %c0_99 = arith.constant 0 : index
    %c0_100 = arith.constant 0 : index
    %402 = vector.load %arg10[%c0_99, %c0_100] : memref<32x2xf32, #tpu.memory_space<vmem>>, vector<32x2xf32>
    %cst_101 = arith.constant dense<0.000000e+00> : vector<64x2xf32>
    %403 = tpu.matmul %401, %402, %cst_101 {dimension_numbers = #tpu.dot_dimension_numbers<[1], [0], [0], [1], [0, 0, 1, 1], [], []>} : vector<64x32xf32>, vector<32x2xf32>, vector<64x2xf32> -> vector<64x2xf32>
    %c0_102 = arith.constant 0 : index
    %c0_103 = arith.constant 0 : index
    %404 = vector.load %arg11[%c0_102, %c0_103] : memref<1x2xf32, #tpu.memory_space<vmem>>, vector<1x2xf32>
    %405 = vector.broadcast %404 : vector<1x2xf32> to vector<64x2xf32>
    %406 = arith.addf %403, %405 : vector<64x2xf32>
    %c0_104 = arith.constant 0 : index
    %c0_105 = arith.constant 0 : index
    %407 = vector.load %arg12[%c0_104, %c0_105] : memref<64x2xf32, #tpu.memory_space<vmem>>, vector<64x2xf32>
    tpu.vector_store %arg12[%c0_104, %c0_105], %406 {strides = array<i32>} : memref<64x2xf32, #tpu.memory_space<vmem>>, vector<64x2xf32>,
    return
  }
}

</mosaic_0001>

<llo_original>
// kernel: tpu_custom_call.1
$region0: #{tpu_custom_call.1}
  #allocation0 [shape = 'u32[]', space=smem, size = 0x4, offset = 0x4, fixed_abs, tag = 'smem constant byte address 0x4 - core index']
  #allocation1 [shape = 'u32[72,128]{1,0:T(1,128)}', space=vmem, size = 0x9000, scoped, tag = 'internal scratch']
  #allocation2 [shape = 'f32[64,32]{1,0:T(8,128)}', space=vmem, size = 0x8000, scoped, tag = 'scratch operand']
  %s0 = inlined_call_operand.vmem [shape: f32[64,4], index: 0, kind: input, shape index: {}]
  %s1 = inlined_call_operand.vmem [shape: f32[64,1], index: 1, kind: input, shape index: {}]
  %s2 = inlined_call_operand.vmem [shape: f32[64,64], index: 2, kind: input, shape index: {}]
  %s3 = inlined_call_operand.hbm [shape: f32[4,128], index: 3, kind: input, shape index: {}]
  %s4 = inlined_call_operand.vmem [shape: f32[1,128], index: 4, kind: input, shape index: {}]
  %s5 = inlined_call_operand.vmem [shape: f32[32,96], index: 5, kind: input, shape index: {}]
  %s6 = inlined_call_operand.hbm [shape: f32[32,32], index: 6, kind: input, shape index: {}]
  %s7 = inlined_call_operand.vmem [shape: f32[1,32], index: 7, kind: input, shape index: {}]
  %s8 = inlined_call_operand.vmem [shape: f32[64,64], index: 8, kind: input, shape index: {}]
  %s9 = inlined_call_operand.vmem [shape: f32[1,64], index: 9, kind: input, shape index: {}]
  %s10 = inlined_call_operand.vmem [shape: f32[32,2], index: 10, kind: input, shape index: {}]
  %s11 = inlined_call_operand.vmem [shape: f32[1,2], index: 11, kind: input, shape index: {}]
  %s12 = inlined_call_operand.vmem [shape: f32[64,2], index: 12, kind: output, shape index: {}]
  %s13 = sld [smem:[#allocation0]]
  $region66: #{tpu_custom_call.1} parent=0
    _
  %s15 = ssub.s32 1, %s13
  %s16 = scalar_select 0, %s15, %s13
  $region1: #{tpu_custom_call.1} parent=0
    #allocation3 [shape = 'u8[2048]{0}', space=vmem, size = 0x800, scoped, tag = 'input window, operand 3, single buffered']
    #allocation4 [shape = 's32[1]{0}', space=sflag, size = 0x4, scoped, tag = 'scoped memory for tpu_custom_call.1']
    #allocation5 [shape = 'u8[16384]{0}', space=vmem, size = 0x4000, scoped, tag = 'input window, operand 6, single buffered']
    #allocation6 [shape = 's32[1]{0}', space=sflag, size = 0x4, scoped, tag = 'scoped memory for tpu_custom_call.1']
    %17 = vsyncpa [#allocation4], 0
    %18 = vsyncpa [#allocation6], 0
    // Predicated region
    $region2: #{tpu_custom_call.1} parent=1 // pred_check
      _
    $region3: #{tpu_custom_call.1} parent=1 // pred_check_branch
      %20 = sbr.rel (0) target = $region5
    $region4: #{tpu_custom_call.1} parent=1 // pred_region
      _
    $region5: #{tpu_custom_call.1} parent=1 // pred_fallthru
      _
    // Predicated region
    $region6: #{tpu_custom_call.1} parent=1 // pred_check
      _
    $region7: #{tpu_custom_call.1} parent=1 // pred_check_branch
      %22 = sbr.rel (0) target = $region9
    $region8: #{tpu_custom_call.1} parent=1 // pred_region
      _
    $region9: #{tpu_custom_call.1} parent=1 // pred_fallthru
      _
    // Predicated region
    $region10: #{tpu_custom_call.1} parent=1 // pred_check
      _
    $region11: #{tpu_custom_call.1} parent=1 // pred_check_branch
      %24 = sbr.rel (0) target = $region13
    $region12: #{tpu_custom_call.1} parent=1 // pred_region
      _
    $region13: #{tpu_custom_call.1} parent=1 // pred_fallthru
      _
    // Predicated region
    $region14: #{tpu_custom_call.1} parent=1 // pred_check
      _
    $region15: #{tpu_custom_call.1} parent=1 // pred_check_branch
      %26 = sbr.rel (0) target = $region17
    $region16: #{tpu_custom_call.1} parent=1 // pred_region
      %28 = vsyncadd [#allocation4], 0
      %s30 = sshll.u32 %s3, 4
      %s31 = int_to_ptr.hbm [resolvable:$true] %s30
      %s32 = sshll.u32 [#allocation3], 4
      %s33 = int_to_ptr.vmem [resolvable:$true] %s32
      %35 = dma.hbm_to_vmem [thread:$0]  %s31, 64, %s33, [#allocation4]
    $region17: #{tpu_custom_call.1} parent=1 // pred_fallthru
      _
    // Predicated region
    $region18: #{tpu_custom_call.1} parent=1 // pred_check
      _
    $region19: #{tpu_custom_call.1} parent=1 // pred_check_branch
      %37 = sbr.rel (0) target = $region21
    $region20: #{tpu_custom_call.1} parent=1 // pred_region
      _
    $region21: #{tpu_custom_call.1} parent=1 // pred_fallthru
      _
    // Predicated region
    $region22: #{tpu_custom_call.1} parent=1 // pred_check
      _
    $region23: #{tpu_custom_call.1} parent=1 // pred_check_branch
      %39 = sbr.rel (0) target = $region25
    $region24: #{tpu_custom_call.1} parent=1 // pred_region
      _
    $region25: #{tpu_custom_call.1} parent=1 // pred_fallthru
      _
    // Predicated region
    $region26: #{tpu_custom_call.1} parent=1 // pred_check
      _
    $region27: #{tpu_custom_call.1} parent=1 // pred_check_branch
      %41 = sbr.rel (0) target = $region29
    $region28: #{tpu_custom_call.1} parent=1 // pred_region
      %43 = vsyncadd [#allocation6], 0
      %s44 = sshll.u32 %s6, 4
      %s45 = int_to_ptr.hbm [resolvable:$true] %s44
      %s46 = sshll.u32 [#allocation5], 4
      %s47 = int_to_ptr.vmem [resolvable:$true] %s46
      %52 = dma.hbm_to_vmem [thread:$0]  %s45, 512, %s47, [#allocation6], 128, 128, 8
    $region29: #{tpu_custom_call.1} parent=1 // pred_fallthru
      _
    // Predicated region
    $region30: #{tpu_custom_call.1} parent=1 // pred_check
      _
    $region31: #{tpu_custom_call.1} parent=1 // pred_check_branch
      %54 = sbr.rel (0) target = $region33
    $region32: #{tpu_custom_call.1} parent=1 // pred_region
      _
    $region33: #{tpu_custom_call.1} parent=1 // pred_fallthru
      _
    // Predicated region
    $region34: #{tpu_custom_call.1} parent=1 // pred_check
      _
    $region35: #{tpu_custom_call.1} parent=1 // pred_check_branch
      %56 = sbr.rel (0) target = $region37
    $region36: #{tpu_custom_call.1} parent=1 // pred_region
      _
    $region37: #{tpu_custom_call.1} parent=1 // pred_fallthru
      _
    // Predicated region
    $region38: #{tpu_custom_call.1} parent=1 // pred_check
      _
    $region39: #{tpu_custom_call.1} parent=1 // pred_check_branch
      %58 = sbr.rel (0) target = $region41
    $region40: #{tpu_custom_call.1} parent=1 // pred_region
      _
    $region41: #{tpu_custom_call.1} parent=1 // pred_fallthru
      _
    // Predicated region
    $region42: #{tpu_custom_call.1} parent=1 // pred_check
      _
    $region43: #{tpu_custom_call.1} parent=1 // pred_check_branch
      %60 = sbr.rel (0) target = $region45
    $region44: #{tpu_custom_call.1} parent=1 // pred_region
      _
    $region45: #{tpu_custom_call.1} parent=1 // pred_fallthru
      _
    // Predicated region
    $region46: #{tpu_custom_call.1} parent=1 // pred_check
      _
    $region47: #{tpu_custom_call.1} parent=1 // pred_check_branch
      %62 = sbr.rel (0) target = $region49
    $region48: #{tpu_custom_call.1} parent=1 // pred_region
      _
    $region49: #{tpu_custom_call.1} parent=1 // pred_fallthru
      _
    // Predicated region
    $region50: #{tpu_custom_call.1} parent=1 // pred_check
      _
    $region51: #{tpu_custom_call.1} parent=1 // pred_check_branch
      %64 = sbr.rel (0) target = $region53
    $region52: #{tpu_custom_call.1} parent=1 // pred_region
      %66 = dma.done [#allocation4], 64
    $region53: #{tpu_custom_call.1} parent=1 // pred_fallthru
      _
    // Predicated region
    $region54: #{tpu_custom_call.1} parent=1 // pred_check
      _
    $region55: #{tpu_custom_call.1} parent=1 // pred_check_branch
      %68 = sbr.rel (0) target = $region57
    $region56: #{tpu_custom_call.1} parent=1 // pred_region
      %70 = dma.done [#allocation6], 512
    $region57: #{tpu_custom_call.1} parent=1 // pred_fallthru
      _
    %v71 = vld [vmem:[%s0] sm:$0xff]
    %v72 = vld [vmem:[%s0 + $0x8] sm:$0xff]
    %v73 = vld [vmem:[%s0 + $0x10] sm:$0xff]
    %v74 = vld [vmem:[%s0 + $0x18] sm:$0xff]
    %v75 = vld [vmem:[%s0 + $0x20] sm:$0xff]
    %v76 = vld [vmem:[%s0 + $0x28] sm:$0xff]
    %v77 = vld [vmem:[%s0 + $0x30] sm:$0xff]
    %v78 = vld [vmem:[%s0 + $0x38] sm:$0xff]
    %v79 = vld [vmem:[#allocation3] sm:$0xf]
    %v80 = vld [vmem:[%s4] sm:$0x1]
    %v82 = vperm.slane %v80, 0
    %vm84 = vcmask 31744
    %v86 = vsel %vm84, %v71, 0
    %v89 = vsel %vm84, %v72, 0
    %v92 = vsel %vm84, %v73, 0
    %v95 = vsel %vm84, %v74, 0
    %v98 = vsel %vm84, %v75, 0
    %v101 = vsel %vm84, %v76, 0
    %v104 = vsel %vm84, %v77, 0
    %v107 = vsel %vm84, %v78, 0
    %vm109 = vcmask 1043456
    %v111 = vsel %vm109, %v79, 0
    %113 = vmatpush.msra.mxu0 0.0
    %114 = vmatpush.msra.mxu0 0.0
    %115 = vmatpush.msra.mxu0 0.0
    %116 = vmatpush.msra.mxu0 0.0
    %117 = vmatpush.msra.mxu0 0.0
    %118 = vmatpush.msra.mxu0 0.0
    %119 = vmatpush.msra.mxu0 0.0
    %120 = vmatpush.msra.mxu0 0.0
    %121 = vmatpush.msra.mxu0 0.0
    %122 = vmatpush.msra.mxu0 0.0
    %123 = vmatpush.msra.mxu0 0.0
    %124 = vmatpush.msra.mxu0 0.0
    %125 = vmatpush.msra.mxu0 0.0
    %126 = vmatpush.msra.mxu0 0.0
    %127 = vmatpush.msra.mxu0 0.0
    %128 = vmatpush.msra.mxu0 %v111
    %129 = vmatmul.f32.gmra.mxu0 %v86
    %v130 = vpop.f32.mrf.mxu0
    %v131 = vadd.f32 %v82, %v130
    %132 = vmatmul.f32.gmra.mxu0 %v89
    %v133 = vpop.f32.mrf.mxu0
    %v134 = vadd.f32 %v82, %v133
    %135 = vmatmul.f32.gmra.mxu0 %v92
    %v136 = vpop.f32.mrf.mxu0
    %v137 = vadd.f32 %v82, %v136
    %138 = vmatmul.f32.gmra.mxu0 %v95
    %v139 = vpop.f32.mrf.mxu0
    %v140 = vadd.f32 %v82, %v139
    %141 = vmatmul.f32.gmra.mxu0 %v98
    %v142 = vpop.f32.mrf.mxu0
    %v143 = vadd.f32 %v82, %v142
    %144 = vmatmul.f32.gmra.mxu0 %v101
    %v145 = vpop.f32.mrf.mxu0
    %v146 = vadd.f32 %v82, %v145
    %147 = vmatmul.f32.gmra.mxu0 %v104
    %v148 = vpop.f32.mrf.mxu0
    %v149 = vadd.f32 %v82, %v148
    %150 = vmatmul.f32.gmra.mxu0 %v107
    %v151 = vpop.f32.mrf.mxu0
    %v152 = vadd.f32 %v82, %v151
    %153 = vdwg.mxu0
    %v154 = vld [vmem:[%s2] sm:$0xff]
    %v155 = vld [vmem:[%s2 + $0x8] sm:$0xff]
    %v156 = vld [vmem:[%s2 + $0x10] sm:$0xff]
    %v157 = vld [vmem:[%s2 + $0x18] sm:$0xff]
    %v158 = vld [vmem:[%s2 + $0x20] sm:$0xff]
    %v159 = vld [vmem:[%s2 + $0x28] sm:$0xff]
    %v160 = vld [vmem:[%s2 + $0x30] sm:$0xff]
    %v161 = vld [vmem:[%s2 + $0x38] sm:$0xff]
    %v162 = vld [vmem:[%s8] sm:$0xff]
    %v163 = vld [vmem:[%s8 + $0x8] sm:$0xff]
    %v164 = vld [vmem:[%s8 + $0x10] sm:$0xff]
    %v165 = vld [vmem:[%s8 + $0x18] sm:$0xff]
    %v166 = vld [vmem:[%s8 + $0x20] sm:$0xff]
    %v167 = vld [vmem:[%s8 + $0x28] sm:$0xff]
    %v168 = vld [vmem:[%s8 + $0x30] sm:$0xff]
    %v169 = vld [vmem:[%s8 + $0x38] sm:$0xff]
    %v170 = vld [vmem:[%s9] sm:$0x1]
    %v172 = vperm.slane %v170, 0
    %vm174 = vcmask 523264
    %v176 = vsel %vm174, %v154, 0
    %v179 = vsel %vm174, %v155, 0
    %v182 = vsel %vm174, %v156, 0
    %v185 = vsel %vm174, %v157, 0
    %v188 = vsel %vm174, %v158, 0
    %v191 = vsel %vm174, %v159, 0
    %v194 = vsel %vm174, %v160, 0
    %v197 = vsel %vm174, %v161, 0
    %199 = vmatpush.msra.mxu0 0.0
    %200 = vmatpush.msra.mxu0 0.0
    %201 = vmatpush.msra.mxu0 0.0
    %202 = vmatpush.msra.mxu0 0.0
    %203 = vmatpush.msra.mxu0 0.0
    %204 = vmatpush.msra.mxu0 0.0
    %205 = vmatpush.msra.mxu0 0.0
    %206 = vmatpush.msra.mxu0 0.0
    %207 = vmatpush.msra.mxu0 %v169
    %208 = vmatpush.msra.mxu0 %v168
    %209 = vmatpush.msra.mxu0 %v167
    %210 = vmatpush.msra.mxu0 %v166
    %211 = vmatpush.msra.mxu0 %v165
    %212 = vmatpush.msra.mxu0 %v164
    %213 = vmatpush.msra.mxu0 %v163
    %214 = vmatpush.msra.mxu0 %v162
    %215 = vmatmul.f32.gmra.mxu0 %v176
    %v216 = vpop.f32.mrf.mxu0
    %v217 = vadd.f32 %v172, %v216
    %218 = vmatmul.f32.gmra.mxu0 %v179
    %v219 = vpop.f32.mrf.mxu0
    %v220 = vadd.f32 %v172, %v219
    %221 = vmatmul.f32.gmra.mxu0 %v182
    %v222 = vpop.f32.mrf.mxu0
    %v223 = vadd.f32 %v172, %v222
    %224 = vmatmul.f32.gmra.mxu0 %v185
    %v225 = vpop.f32.mrf.mxu0
    %v226 = vadd.f32 %v172, %v225
    %227 = vmatmul.f32.gmra.mxu0 %v188
    %v228 = vpop.f32.mrf.mxu0
    %v229 = vadd.f32 %v172, %v228
    %230 = vmatmul.f32.gmra.mxu0 %v191
    %v231 = vpop.f32.mrf.mxu0
    %v232 = vadd.f32 %v172, %v231
    %233 = vmatmul.f32.gmra.mxu0 %v194
    %v234 = vpop.f32.mrf.mxu0
    %v235 = vadd.f32 %v172, %v234
    %236 = vmatmul.f32.gmra.mxu0 %v197
    %v237 = vpop.f32.mrf.mxu0
    %v238 = vadd.f32 %v172, %v237
    %239 = vdwg.mxu0
    %v240 = vld [vmem:[%s1] sm:$0xff]
    %v241 = vld [vmem:[%s1 + $0x8] sm:$0xff]
    %v242 = vld [vmem:[%s1 + $0x10] sm:$0xff]
    %v243 = vld [vmem:[%s1 + $0x18] sm:$0xff]
    %v244 = vld [vmem:[%s1 + $0x20] sm:$0xff]
    %v245 = vld [vmem:[%s1 + $0x28] sm:$0xff]
    %v246 = vld [vmem:[%s1 + $0x30] sm:$0xff]
    %v247 = vld [vmem:[%s1 + $0x38] sm:$0xff]
    %v248 = vtanh.pop %v217
    %v249 = vtanh.pop %v220
    %v250 = vtanh.pop %v223
    %v251 = vtanh.pop %v226
    %v252 = vtanh.pop %v229
    %v253 = vtanh.pop %v232
    %v254 = vtanh.pop %v235
    %v255 = vtanh.pop %v238
    %257 = vset.pattern.permute.xlu0 0
    %258 = vperm.xlu0 %257, %v240
    %v259 = vpop.permute.xlu0 %258
    %262 = vset.pattern.permute.xlu0 0
    %263 = vperm.xlu0 %262, %v241
    %v264 = vpop.permute.xlu0 %263
    %267 = vset.pattern.permute.xlu0 0
    %268 = vperm.xlu0 %267, %v242
    %v269 = vpop.permute.xlu0 %268
    %272 = vset.pattern.permute.xlu0 0
    %273 = vperm.xlu0 %272, %v243
    %v274 = vpop.permute.xlu0 %273
    %277 = vset.pattern.permute.xlu0 0
    %278 = vperm.xlu0 %277, %v244
    %v279 = vpop.permute.xlu0 %278
    %282 = vset.pattern.permute.xlu0 0
    %283 = vperm.xlu0 %282, %v245
    %v284 = vpop.permute.xlu0 %283
    %287 = vset.pattern.permute.xlu0 0
    %288 = vperm.xlu0 %287, %v246
    %v289 = vpop.permute.xlu0 %288
    %292 = vset.pattern.permute.xlu0 0
    %293 = vperm.xlu0 %292, %v247
    %v294 = vpop.permute.xlu0 %293
    %v296 = vmul.f32 %v248, %v259
    %v297 = vmul.f32 %v249, %v264
    %v298 = vmul.f32 %v250, %v269
    %v299 = vmul.f32 %v251, %v274
    %v300 = vmul.f32 %v252, %v279
    %v301 = vmul.f32 %v253, %v284
    %v302 = vmul.f32 %v254, %v289
    %v303 = vmul.f32 %v255, %v294
    %v304 = vmul.f32 %v296, 0.1
    %v305 = vmul.f32 %v297, 0.1
    %v306 = vmul.f32 %v298, 0.1
    %v307 = vmul.f32 %v299, 0.1
    %v308 = vmul.f32 %v300, 0.1
    %v309 = vmul.f32 %v301, 0.1
    %v310 = vmul.f32 %v302, 0.1
    %v311 = vmul.f32 %v303, 0.1
    %v312 = vld [vmem:[%s5] sm:$0xff]
    %v313 = vld [vmem:[%s5 + $0x8] sm:$0xff]
    %v314 = vld [vmem:[%s5 + $0x10] sm:$0xff]
    %v315 = vld [vmem:[%s5 + $0x18] sm:$0xff]
    %v316 = vld [vmem:[#allocation5] sm:$0xff]
    %v317 = vld [vmem:[#allocation5 + $0x8] sm:$0xff]
    %v318 = vld [vmem:[#allocation5 + $0x10] sm:$0xff]
    %v319 = vld [vmem:[#allocation5 + $0x18] sm:$0xff]
    %v320 = vld [vmem:[%s7] sm:$0x1]
    %vm321 = vcmask 261120
    %v323 = vsel %vm321, 0.0, 0
    %325 = vmatpush.msra.mxu0 0.0
    %326 = vmatpush.msra.mxu0 0.0
    %327 = vmatpush.msra.mxu0 0.0
    %328 = vmatpush.msra.mxu0 0.0
    %329 = vmatpush.msra.mxu0 0.0
    %330 = vmatpush.msra.mxu0 0.0
    %331 = vmatpush.msra.mxu0 0.0
    %332 = vmatpush.msra.mxu0 0.0
    %333 = vmatpush.msra.mxu0 0.0
    %334 = vmatpush.msra.mxu0 0.0
    %335 = vmatpush.msra.mxu0 0.0
    %336 = vmatpush.msra.mxu0 0.0
    %337 = vmatpush.msra.mxu0 %v315
    %338 = vmatpush.msra.mxu0 %v314
    %339 = vmatpush.msra.mxu0 %v313
    %340 = vmatpush.msra.mxu0 %v312
    %341 = vmatmul.f32.gmra.mxu0 %v323
    %v342 = vpop.f32.mrf.mxu0
    %v343 = vadd.f32 0.0, %v342
    %344 = vdwg.mxu0
    %v345 = vadd.f32 %v131, %v343
    %v346 = vxor.u32 %v345, 2147483648
    %v347 = vmul.f32 %v346, 1.442695
    %v348 = vpow.pop %v347
    %v349 = vadd.f32 %v348, 1.0
    %v350 = vrcp.pop %v349
    %v351 = vmul.f32 %v349, %v350
    %v352 = vsub.f32 1.0, %v351
    %v353 = vmul.f32 %v350, %v352
    %v354 = vadd.f32 %v350, %v353
    %vm355 = vweird.f32 %v349
    %vm356 = vweird.f32 %v350
    %vm357 = vmor %vm355, %vm356
    %v358 = vsel %vm357, %v350, %v354
    %v359 = vand.u32 2147483647, %v349
    %vm360 = vcmp.eq.f32.partialorder %v359, 8.507059e+37
    %v361 = vand.u32 %v349, 2147483648
    %v362 = vor.u32 1.1754944e-38, %v361
    %v363 = vsel %vm360, %v362, %v358
    %v364 = vmul.f32 1.0, %v363
    %v365 = vsub.f32 1.0, %v364
    %v366 = vmul.f32 %v365, 0.0
    %v367 = vtanh.pop %v345
    %369 = vrot.lane.b32.xlu0 %v367, 96
    %v370 = vpop.permute.xlu0 %369
    %v372 = vmul.f32 %v364, %v370
    %v373 = vadd.f32 %v366, %v372
    %v375 = vperm.slane %v320, 0
    %378 = vrot.lane.b32.xlu0 %v373, 96
    %v379 = vpop.permute.xlu0 %378
    %v380 = vsel %vm321, %v379, 0
    %382 = vmatpush.msra.mxu0 0.0
    %383 = vmatpush.msra.mxu0 0.0
    %384 = vmatpush.msra.mxu0 0.0
    %385 = vmatpush.msra.mxu0 0.0
    %386 = vmatpush.msra.mxu0 0.0
    %387 = vmatpush.msra.mxu0 0.0
    %388 = vmatpush.msra.mxu0 0.0
    %389 = vmatpush.msra.mxu0 0.0
    %390 = vmatpush.msra.mxu0 0.0
    %391 = vmatpush.msra.mxu0 0.0
    %392 = vmatpush.msra.mxu0 0.0
    %393 = vmatpush.msra.mxu0 0.0
    %394 = vmatpush.msra.mxu0 %v319
    %395 = vmatpush.msra.mxu0 %v318
    %396 = vmatpush.msra.mxu0 %v317
    %397 = vmatpush.msra.mxu0 %v316
    %398 = vmatmul.f32.gmra.mxu0 %v380
    %v399 = vpop.f32.mrf.mxu0
    %v400 = vadd.f32 %v375, %v399
    %401 = vdwg.mxu0
    %403 = vrot.lane.b32.xlu0 %v131, 32
    %v404 = vpop.permute.xlu0 %403
    %v406 = vadd.f32 %v400, %v404
    %v407 = vtanh.pop %v406
    %v408 = vmul.f32 %v364, %v407
    %v409 = vadd.f32 %v366, %v408
    %v410 = vadd.f32 %v409, %v304
    %v411 = vadd.f32 %v373, %v304
    %412 = vst.msk [vmem:[#allocation2] sm:$0xff] %vm321, %v410
    %v414 = vsel %vm321, %v410, 0
    %416 = vmatpush.msra.mxu0 0.0
    %417 = vmatpush.msra.mxu0 0.0
    %418 = vmatpush.msra.mxu0 0.0
    %419 = vmatpush.msra.mxu0 0.0
    %420 = vmatpush.msra.mxu0 0.0
    %421 = vmatpush.msra.mxu0 0.0
    %422 = vmatpush.msra.mxu0 0.0
    %423 = vmatpush.msra.mxu0 0.0
    %424 = vmatpush.msra.mxu0 0.0
    %425 = vmatpush.msra.mxu0 0.0
    %426 = vmatpush.msra.mxu0 0.0
    %427 = vmatpush.msra.mxu0 0.0
    %428 = vmatpush.msra.mxu0 %v315
    %429 = vmatpush.msra.mxu0 %v314
    %430 = vmatpush.msra.mxu0 %v313
    %431 = vmatpush.msra.mxu0 %v312
    %432 = vmatmul.f32.gmra.mxu0 %v414
    %v433 = vpop.f32.mrf.mxu0
    %v434 = vadd.f32 0.0, %v433
    %435 = vdwg.mxu0
    %v436 = vadd.f32 %v134, %v434
    %v437 = vxor.u32 %v436, 2147483648
    %v438 = vmul.f32 %v437, 1.442695
    %v439 = vpow.pop %v438
    %v440 = vadd.f32 %v439, 1.0
    %v441 = vrcp.pop %v440
    %v442 = vmul.f32 %v440, %v441
    %v443 = vsub.f32 1.0, %v442
    %v444 = vmul.f32 %v441, %v443
    %v445 = vadd.f32 %v441, %v444
    %vm446 = vweird.f32 %v440
    %vm447 = vweird.f32 %v441
    %vm448 = vmor %vm446, %vm447
    %v449 = vsel %vm448, %v441, %v445
    %v450 = vand.u32 2147483647, %v440
    %vm451 = vcmp.eq.f32.partialorder %v450, 8.507059e+37
    %v452 = vand.u32 %v440, 2147483648
    %v453 = vor.u32 1.1754944e-38, %v452
    %v454 = vsel %vm451, %v453, %v449
    %v455 = vmul.f32 1.0, %v454
    %v456 = vsub.f32 1.0, %v455
    %v457 = vmul.f32 %v456, %v411
    %v458 = vtanh.pop %v436
    %460 = vrot.lane.b32.xlu0 %v458, 96
    %v461 = vpop.permute.xlu0 %460
    %v463 = vmul.f32 %v455, %v461
    %v464 = vadd.f32 %v457, %v463
    %v465 = vmul.f32 %v456, %v410
    %467 = vrot.lane.b32.xlu0 %v464, 96
    %v468 = vpop.permute.xlu0 %467
    %v469 = vsel %vm321, %v468, 0
    %471 = vmatpush.msra.mxu0 0.0
    %472 = vmatpush.msra.mxu0 0.0
    %473 = vmatpush.msra.mxu0 0.0
    %474 = vmatpush.msra.mxu0 0.0
    %475 = vmatpush.msra.mxu0 0.0
    %476 = vmatpush.msra.mxu0 0.0
    %477 = vmatpush.msra.mxu0 0.0
    %478 = vmatpush.msra.mxu0 0.0
    %479 = vmatpush.msra.mxu0 0.0
    %480 = vmatpush.msra.mxu0 0.0
    %481 = vmatpush.msra.mxu0 0.0
    %482 = vmatpush.msra.mxu0 0.0
    %483 = vmatpush.msra.mxu0 %v319
    %484 = vmatpush.msra.mxu0 %v318
    %485 = vmatpush.msra.mxu0 %v317
    %486 = vmatpush.msra.mxu0 %v316
    %487 = vmatmul.f32.gmra.mxu0 %v469
    %v488 = vpop.f32.mrf.mxu0
    %v489 = vadd.f32 %v375, %v488
    %490 = vdwg.mxu0
    %492 = vrot.lane.b32.xlu0 %v134, 32
    %v493 = vpop.permute.xlu0 %492
    %v495 = vadd.f32 %v489, %v493
    %v496 = vtanh.pop %v495
    %v497 = vmul.f32 %v455, %v496
    %v498 = vadd.f32 %v465, %v497
    %v499 = vadd.f32 %v498, %v305
    %v500 = vadd.f32 %v464, %v305
    %501 = vst.msk [vmem:[#allocation2 + $0x8] sm:$0xff] %vm321, %v499
    %v503 = vsel %vm321, %v499, 0
    %505 = vmatpush.msra.mxu0 0.0
    %506 = vmatpush.msra.mxu0 0.0
    %507 = vmatpush.msra.mxu0 0.0
    %508 = vmatpush.msra.mxu0 0.0
    %509 = vmatpush.msra.mxu0 0.0
    %510 = vmatpush.msra.mxu0 0.0
    %511 = vmatpush.msra.mxu0 0.0
    %512 = vmatpush.msra.mxu0 0.0
    %513 = vmatpush.msra.mxu0 0.0
    %514 = vmatpush.msra.mxu0 0.0
    %515 = vmatpush.msra.mxu0 0.0
    %516 = vmatpush.msra.mxu0 0.0
    %517 = vmatpush.msra.mxu0 %v315
    %518 = vmatpush.msra.mxu0 %v314
    %519 = vmatpush.msra.mxu0 %v313
    %520 = vmatpush.msra.mxu0 %v312
    %521 = vmatmul.f32.gmra.mxu0 %v503
    %v522 = vpop.f32.mrf.mxu0
    %v523 = vadd.f32 0.0, %v522
    %524 = vdwg.mxu0
    %v525 = vadd.f32 %v137, %v523
    %v526 = vxor.u32 %v525, 2147483648
    %v527 = vmul.f32 %v526, 1.442695
    %v528 = vpow.pop %v527
    %v529 = vadd.f32 %v528, 1.0
    %v530 = vrcp.pop %v529
    %v531 = vmul.f32 %v529, %v530
    %v532 = vsub.f32 1.0, %v531
    %v533 = vmul.f32 %v530, %v532
    %v534 = vadd.f32 %v530, %v533
    %vm535 = vweird.f32 %v529
    %vm536 = vweird.f32 %v530
    %vm537 = vmor %vm535, %vm536
    %v538 = vsel %vm537, %v530, %v534
    %v539 = vand.u32 2147483647, %v529
    %vm540 = vcmp.eq.f32.partialorder %v539, 8.507059e+37
    %v541 = vand.u32 %v529, 2147483648
    %v542 = vor.u32 1.1754944e-38, %v541
    %v543 = vsel %vm540, %v542, %v538
    %v544 = vmul.f32 1.0, %v543
    %v545 = vsub.f32 1.0, %v544
    %v546 = vmul.f32 %v545, %v500
    %v547 = vtanh.pop %v525
    %549 = vrot.lane.b32.xlu0 %v547, 96
    %v550 = vpop.permute.xlu0 %549
    %v552 = vmul.f32 %v544, %v550
    %v553 = vadd.f32 %v546, %v552
    %v554 = vmul.f32 %v545, %v499
    %556 = vrot.lane.b32.xlu0 %v553, 96
    %v557 = vpop.permute.xlu0 %556
    %v558 = vsel %vm321, %v557, 0
    %560 = vmatpush.msra.mxu0 0.0
    %561 = vmatpush.msra.mxu0 0.0
    %562 = vmatpush.msra.mxu0 0.0
    %563 = vmatpush.msra.mxu0 0.0
    %564 = vmatpush.msra.mxu0 0.0
    %565 = vmatpush.msra.mxu0 0.0
    %566 = vmatpush.msra.mxu0 0.0
    %567 = vmatpush.msra.mxu0 0.0
    %568 = vmatpush.msra.mxu0 0.0
    %569 = vmatpush.msra.mxu0 0.0
    %570 = vmatpush.msra.mxu0 0.0
    %571 = vmatpush.msra.mxu0 0.0
    %572 = vmatpush.msra.mxu0 %v319
    %573 = vmatpush.msra.mxu0 %v318
    %574 = vmatpush.msra.mxu0 %v317
    %575 = vmatpush.msra.mxu0 %v316
    %576 = vmatmul.f32.gmra.mxu0 %v558
    %v577 = vpop.f32.mrf.mxu0
    %v578 = vadd.f32 %v375, %v577
    %579 = vdwg.mxu0
    %581 = vrot.lane.b32.xlu0 %v137, 32
    %v582 = vpop.permute.xlu0 %581
    %v584 = vadd.f32 %v578, %v582
    %v585 = vtanh.pop %v584
    %v586 = vmul.f32 %v544, %v585
    %v587 = vadd.f32 %v554, %v586
    %v588 = vadd.f32 %v587, %v306
    %v589 = vadd.f32 %v553, %v306
    %590 = vst.msk [vmem:[#allocation2 + $0x10] sm:$0xff] %vm321, %v588
    %v592 = vsel %vm321, %v588, 0
    %594 = vmatpush.msra.mxu0 0.0
    %595 = vmatpush.msra.mxu0 0.0
    %596 = vmatpush.msra.mxu0 0.0
    %597 = vmatpush.msra.mxu0 0.0
    %598 = vmatpush.msra.mxu0 0.0
    %599 = vmatpush.msra.mxu0 0.0
    %600 = vmatpush.msra.mxu0 0.0
    %601 = vmatpush.msra.mxu0 0.0
    %602 = vmatpush.msra.mxu0 0.0
    %603 = vmatpush.msra.mxu0 0.0
    %604 = vmatpush.msra.mxu0 0.0
    %605 = vmatpush.msra.mxu0 0.0
    %606 = vmatpush.msra.mxu0 %v315
    %607 = vmatpush.msra.mxu0 %v314
    %608 = vmatpush.msra.mxu0 %v313
    %609 = vmatpush.msra.mxu0 %v312
    %610 = vmatmul.f32.gmra.mxu0 %v592
    %v611 = vpop.f32.mrf.mxu0
    %v612 = vadd.f32 0.0, %v611
    %613 = vdwg.mxu0
    %v614 = vadd.f32 %v140, %v612
    %v615 = vxor.u32 %v614, 2147483648
    %v616 = vmul.f32 %v615, 1.442695
    %v617 = vpow.pop %v616
    %v618 = vadd.f32 %v617, 1.0
    %v619 = vrcp.pop %v618
    %v620 = vmul.f32 %v618, %v619
    %v621 = vsub.f32 1.0, %v620
    %v622 = vmul.f32 %v619, %v621
    %v623 = vadd.f32 %v619, %v622
    %vm624 = vweird.f32 %v618
    %vm625 = vweird.f32 %v619
    %vm626 = vmor %vm624, %vm625
    %v627 = vsel %vm626, %v619, %v623
    %v628 = vand.u32 2147483647, %v618
    %vm629 = vcmp.eq.f32.partialorder %v628, 8.507059e+37
    %v630 = vand.u32 %v618, 2147483648
    %v631 = vor.u32 1.1754944e-38, %v630
    %v632 = vsel %vm629, %v631, %v627
    %v633 = vmul.f32 1.0, %v632
    %v634 = vsub.f32 1.0, %v633
    %v635 = vmul.f32 %v634, %v589
    %v636 = vtanh.pop %v614
    %638 = vrot.lane.b32.xlu0 %v636, 96
    %v639 = vpop.permute.xlu0 %638
    %v641 = vmul.f32 %v633, %v639
    %v642 = vadd.f32 %v635, %v641
    %v643 = vmul.f32 %v634, %v588
    %645 = vrot.lane.b32.xlu0 %v642, 96
    %v646 = vpop.permute.xlu0 %645
    %v647 = vsel %vm321, %v646, 0
    %649 = vmatpush.msra.mxu0 0.0
    %650 = vmatpush.msra.mxu0 0.0
    %651 = vmatpush.msra.mxu0 0.0
    %652 = vmatpush.msra.mxu0 0.0
    %653 = vmatpush.msra.mxu0 0.0
    %654 = vmatpush.msra.mxu0 0.0
    %655 = vmatpush.msra.mxu0 0.0
    %656 = vmatpush.msra.mxu0 0.0
    %657 = vmatpush.msra.mxu0 0.0
    %658 = vmatpush.msra.mxu0 0.0
    %659 = vmatpush.msra.mxu0 0.0
    %660 = vmatpush.msra.mxu0 0.0
    %661 = vmatpush.msra.mxu0 %v319
    %662 = vmatpush.msra.mxu0 %v318
    %663 = vmatpush.msra.mxu0 %v317
    %664 = vmatpush.msra.mxu0 %v316
    %665 = vmatmul.f32.gmra.mxu0 %v647
    %v666 = vpop.f32.mrf.mxu0
    %v667 = vadd.f32 %v375, %v666
    %668 = vdwg.mxu0
    %670 = vrot.lane.b32.xlu0 %v140, 32
    %v671 = vpop.permute.xlu0 %670
    %v673 = vadd.f32 %v667, %v671
    %v674 = vtanh.pop %v673
    %v675 = vmul.f32 %v633, %v674
    %v676 = vadd.f32 %v643, %v675
    %v677 = vadd.f32 %v676, %v307
    %v678 = vadd.f32 %v642, %v307
    %679 = vst.msk [vmem:[#allocation2 + $0x18] sm:$0xff] %vm321, %v677
    %v681 = vsel %vm321, %v677, 0
    %683 = vmatpush.msra.mxu0 0.0
    %684 = vmatpush.msra.mxu0 0.0
    %685 = vmatpush.msra.mxu0 0.0
    %686 = vmatpush.msra.mxu0 0.0
    %687 = vmatpush.msra.mxu0 0.0
    %688 = vmatpush.msra.mxu0 0.0
    %689 = vmatpush.msra.mxu0 0.0
    %690 = vmatpush.msra.mxu0 0.0
    %691 = vmatpush.msra.mxu0 0.0
    %692 = vmatpush.msra.mxu0 0.0
    %693 = vmatpush.msra.mxu0 0.0
    %694 = vmatpush.msra.mxu0 0.0
    %695 = vmatpush.msra.mxu0 %v315
    %696 = vmatpush.msra.mxu0 %v314
    %697 = vmatpush.msra.mxu0 %v313
    %698 = vmatpush.msra.mxu0 %v312
    %699 = vmatmul.f32.gmra.mxu0 %v681
    %v700 = vpop.f32.mrf.mxu0
    %v701 = vadd.f32 0.0, %v700
    %702 = vdwg.mxu0
    %v703 = vadd.f32 %v143, %v701
    %v704 = vxor.u32 %v703, 2147483648
    %v705 = vmul.f32 %v704, 1.442695
    %v706 = vpow.pop %v705
    %v707 = vadd.f32 %v706, 1.0
    %v708 = vrcp.pop %v707
    %v709 = vmul.f32 %v707, %v708
    %v710 = vsub.f32 1.0, %v709
    %v711 = vmul.f32 %v708, %v710
    %v712 = vadd.f32 %v708, %v711
    %vm713 = vweird.f32 %v707
    %vm714 = vweird.f32 %v708
    %vm715 = vmor %vm713, %vm714
    %v716 = vsel %vm715, %v708, %v712
    %v717 = vand.u32 2147483647, %v707
    %vm718 = vcmp.eq.f32.partialorder %v717, 8.507059e+37
    %v719 = vand.u32 %v707, 2147483648
    %v720 = vor.u32 1.1754944e-38, %v719
    %v721 = vsel %vm718, %v720, %v716
    %v722 = vmul.f32 1.0, %v721
    %v723 = vsub.f32 1.0, %v722
    %v724 = vmul.f32 %v723, %v678
    %v725 = vtanh.pop %v703
    %727 = vrot.lane.b32.xlu0 %v725, 96
    %v728 = vpop.permute.xlu0 %727
    %v730 = vmul.f32 %v722, %v728
    %v731 = vadd.f32 %v724, %v730
    %v732 = vmul.f32 %v723, %v677
    %734 = vrot.lane.b32.xlu0 %v731, 96
    %v735 = vpop.permute.xlu0 %734
    %v736 = vsel %vm321, %v735, 0
    %738 = vmatpush.msra.mxu0 0.0
    %739 = vmatpush.msra.mxu0 0.0
    %740 = vmatpush.msra.mxu0 0.0
    %741 = vmatpush.msra.mxu0 0.0
    %742 = vmatpush.msra.mxu0 0.0
    %743 = vmatpush.msra.mxu0 0.0
    %744 = vmatpush.msra.mxu0 0.0
    %745 = vmatpush.msra.mxu0 0.0
    %746 = vmatpush.msra.mxu0 0.0
    %747 = vmatpush.msra.mxu0 0.0
    %748 = vmatpush.msra.mxu0 0.0
    %749 = vmatpush.msra.mxu0 0.0
    %750 = vmatpush.msra.mxu0 %v319
    %751 = vmatpush.msra.mxu0 %v318
    %752 = vmatpush.msra.mxu0 %v317
    %753 = vmatpush.msra.mxu0 %v316
    %754 = vmatmul.f32.gmra.mxu0 %v736
    %v755 = vpop.f32.mrf.mxu0
    %v756 = vadd.f32 %v375, %v755
    %757 = vdwg.mxu0
    %759 = vrot.lane.b32.xlu0 %v143, 32
    %v760 = vpop.permute.xlu0 %759
    %v762 = vadd.f32 %v756, %v760
    %v763 = vtanh.pop %v762
    %v764 = vmul.f32 %v722, %v763
    %v765 = vadd.f32 %v732, %v764
    %v766 = vadd.f32 %v765, %v308
    %v767 = vadd.f32 %v731, %v308
    %768 = vst.msk [vmem:[#allocation2 + $0x20] sm:$0xff] %vm321, %v766
    %v770 = vsel %vm321, %v766, 0
    %772 = vmatpush.msra.mxu0 0.0
    %773 = vmatpush.msra.mxu0 0.0
    %774 = vmatpush.msra.mxu0 0.0
    %775 = vmatpush.msra.mxu0 0.0
    %776 = vmatpush.msra.mxu0 0.0
    %777 = vmatpush.msra.mxu0 0.0
    %778 = vmatpush.msra.mxu0 0.0
    %779 = vmatpush.msra.mxu0 0.0
    %780 = vmatpush.msra.mxu0 0.0
    %781 = vmatpush.msra.mxu0 0.0
    %782 = vmatpush.msra.mxu0 0.0
    %783 = vmatpush.msra.mxu0 0.0
    %784 = vmatpush.msra.mxu0 %v315
    %785 = vmatpush.msra.mxu0 %v314
    %786 = vmatpush.msra.mxu0 %v313
    %787 = vmatpush.msra.mxu0 %v312
    %788 = vmatmul.f32.gmra.mxu0 %v770
    %v789 = vpop.f32.mrf.mxu0
    %v790 = vadd.f32 0.0, %v789
    %791 = vdwg.mxu0
    %v792 = vadd.f32 %v146, %v790
    %v793 = vxor.u32 %v792, 2147483648
    %v794 = vmul.f32 %v793, 1.442695
    %v795 = vpow.pop %v794
    %v796 = vadd.f32 %v795, 1.0
    %v797 = vrcp.pop %v796
    %v798 = vmul.f32 %v796, %v797
    %v799 = vsub.f32 1.0, %v798
    %v800 = vmul.f32 %v797, %v799
    %v801 = vadd.f32 %v797, %v800
    %vm802 = vweird.f32 %v796
    %vm803 = vweird.f32 %v797
    %vm804 = vmor %vm802, %vm803
    %v805 = vsel %vm804, %v797, %v801
    %v806 = vand.u32 2147483647, %v796
    %vm807 = vcmp.eq.f32.partialorder %v806, 8.507059e+37
    %v808 = vand.u32 %v796, 2147483648
    %v809 = vor.u32 1.1754944e-38, %v808
    %v810 = vsel %vm807, %v809, %v805
    %v811 = vmul.f32 1.0, %v810
    %v812 = vsub.f32 1.0, %v811
    %v813 = vmul.f32 %v812, %v767
    %v814 = vtanh.pop %v792
    %816 = vrot.lane.b32.xlu0 %v814, 96
    %v817 = vpop.permute.xlu0 %816
    %v819 = vmul.f32 %v811, %v817
    %v820 = vadd.f32 %v813, %v819
    %v821 = vmul.f32 %v812, %v766
    %823 = vrot.lane.b32.xlu0 %v820, 96
    %v824 = vpop.permute.xlu0 %823
    %v825 = vsel %vm321, %v824, 0
    %827 = vmatpush.msra.mxu0 0.0
    %828 = vmatpush.msra.mxu0 0.0
    %829 = vmatpush.msra.mxu0 0.0
    %830 = vmatpush.msra.mxu0 0.0
    %831 = vmatpush.msra.mxu0 0.0
    %832 = vmatpush.msra.mxu0 0.0
    %833 = vmatpush.msra.mxu0 0.0
    %834 = vmatpush.msra.mxu0 0.0
    %835 = vmatpush.msra.mxu0 0.0
    %836 = vmatpush.msra.mxu0 0.0
    %837 = vmatpush.msra.mxu0 0.0
    %838 = vmatpush.msra.mxu0 0.0
    %839 = vmatpush.msra.mxu0 %v319
    %840 = vmatpush.msra.mxu0 %v318
    %841 = vmatpush.msra.mxu0 %v317
    %842 = vmatpush.msra.mxu0 %v316
    %843 = vmatmul.f32.gmra.mxu0 %v825
    %v844 = vpop.f32.mrf.mxu0
    %v845 = vadd.f32 %v375, %v844
    %846 = vdwg.mxu0
    %848 = vrot.lane.b32.xlu0 %v146, 32
    %v849 = vpop.permute.xlu0 %848
    %v851 = vadd.f32 %v845, %v849
    %v852 = vtanh.pop %v851
    %v853 = vmul.f32 %v811, %v852
    %v854 = vadd.f32 %v821, %v853
    %v855 = vadd.f32 %v854, %v309
    %v856 = vadd.f32 %v820, %v309
    %857 = vst.msk [vmem:[#allocation2 + $0x28] sm:$0xff] %vm321, %v855
    %v859 = vsel %vm321, %v855, 0
    %861 = vmatpush.msra.mxu0 0.0
    %862 = vmatpush.msra.mxu0 0.0
    %863 = vmatpush.msra.mxu0 0.0
    %864 = vmatpush.msra.mxu0 0.0
    %865 = vmatpush.msra.mxu0 0.0
    %866 = vmatpush.msra.mxu0 0.0
    %867 = vmatpush.msra.mxu0 0.0
    %868 = vmatpush.msra.mxu0 0.0
    %869 = vmatpush.msra.mxu0 0.0
    %870 = vmatpush.msra.mxu0 0.0
    %871 = vmatpush.msra.mxu0 0.0
    %872 = vmatpush.msra.mxu0 0.0
    %873 = vmatpush.msra.mxu0 %v315
    %874 = vmatpush.msra.mxu0 %v314
    %875 = vmatpush.msra.mxu0 %v313
    %876 = vmatpush.msra.mxu0 %v312
    %877 = vmatmul.f32.gmra.mxu0 %v859
    %v878 = vpop.f32.mrf.mxu0
    %v879 = vadd.f32 0.0, %v878
    %880 = vdwg.mxu0
    %v881 = vadd.f32 %v149, %v879
    %v882 = vxor.u32 %v881, 2147483648
    %v883 = vmul.f32 %v882, 1.442695
    %v884 = vpow.pop %v883
    %v885 = vadd.f32 %v884, 1.0
    %v886 = vrcp.pop %v885
    %v887 = vmul.f32 %v885, %v886
    %v888 = vsub.f32 1.0, %v887
    %v889 = vmul.f32 %v886, %v888
    %v890 = vadd.f32 %v886, %v889
    %vm891 = vweird.f32 %v885
    %vm892 = vweird.f32 %v886
    %vm893 = vmor %vm891, %vm892
    %v894 = vsel %vm893, %v886, %v890
    %v895 = vand.u32 2147483647, %v885
    %vm896 = vcmp.eq.f32.partialorder %v895, 8.507059e+37
    %v897 = vand.u32 %v885, 2147483648
    %v898 = vor.u32 1.1754944e-38, %v897
    %v899 = vsel %vm896, %v898, %v894
    %v900 = vmul.f32 1.0, %v899
    %v901 = vsub.f32 1.0, %v900
    %v902 = vmul.f32 %v901, %v856
    %v903 = vtanh.pop %v881
    %905 = vrot.lane.b32.xlu0 %v903, 96
    %v906 = vpop.permute.xlu0 %905
    %v908 = vmul.f32 %v900, %v906
    %v909 = vadd.f32 %v902, %v908
    %v910 = vmul.f32 %v901, %v855
    %912 = vrot.lane.b32.xlu0 %v909, 96
    %v913 = vpop.permute.xlu0 %912
    %v914 = vsel %vm321, %v913, 0
    %916 = vmatpush.msra.mxu0 0.0
    %917 = vmatpush.msra.mxu0 0.0
    %918 = vmatpush.msra.mxu0 0.0
    %919 = vmatpush.msra.mxu0 0.0
    %920 = vmatpush.msra.mxu0 0.0
    %921 = vmatpush.msra.mxu0 0.0
    %922 = vmatpush.msra.mxu0 0.0
    %923 = vmatpush.msra.mxu0 0.0
    %924 = vmatpush.msra.mxu0 0.0
    %925 = vmatpush.msra.mxu0 0.0
    %926 = vmatpush.msra.mxu0 0.0
    %927 = vmatpush.msra.mxu0 0.0
    %928 = vmatpush.msra.mxu0 %v319
    %929 = vmatpush.msra.mxu0 %v318
    %930 = vmatpush.msra.mxu0 %v317
    %931 = vmatpush.msra.mxu0 %v316
    %932 = vmatmul.f32.gmra.mxu0 %v914
    %v933 = vpop.f32.mrf.mxu0
    %v934 = vadd.f32 %v375, %v933
    %935 = vdwg.mxu0
    %937 = vrot.lane.b32.xlu0 %v149, 32
    %v938 = vpop.permute.xlu0 %937
    %v940 = vadd.f32 %v934, %v938
    %v941 = vtanh.pop %v940
    %v942 = vmul.f32 %v900, %v941
    %v943 = vadd.f32 %v910, %v942
    %v944 = vadd.f32 %v943, %v310
    %v945 = vadd.f32 %v909, %v310
    %946 = vst.msk [vmem:[#allocation2 + $0x30] sm:$0xff] %vm321, %v944
    %v948 = vsel %vm321, %v944, 0
    %950 = vmatpush.msra.mxu0 0.0
    %951 = vmatpush.msra.mxu0 0.0
    %952 = vmatpush.msra.mxu0 0.0
    %953 = vmatpush.msra.mxu0 0.0
    %954 = vmatpush.msra.mxu0 0.0
    %955 = vmatpush.msra.mxu0 0.0
    %956 = vmatpush.msra.mxu0 0.0
    %957 = vmatpush.msra.mxu0 0.0
    %958 = vmatpush.msra.mxu0 0.0
    %959 = vmatpush.msra.mxu0 0.0
    %960 = vmatpush.msra.mxu0 0.0
    %961 = vmatpush.msra.mxu0 0.0
    %962 = vmatpush.msra.mxu0 %v315
    %963 = vmatpush.msra.mxu0 %v314
    %964 = vmatpush.msra.mxu0 %v313
    %965 = vmatpush.msra.mxu0 %v312
    %966 = vmatmul.f32.gmra.mxu0 %v948
    %v967 = vpop.f32.mrf.mxu0
    %v968 = vadd.f32 0.0, %v967
    %969 = vdwg.mxu0
    %v970 = vadd.f32 %v152, %v968
    %v971 = vxor.u32 %v970, 2147483648
    %v972 = vmul.f32 %v971, 1.442695
    %v973 = vpow.pop %v972
    %v974 = vadd.f32 %v973, 1.0
    %v975 = vrcp.pop %v974
    %v976 = vmul.f32 %v974, %v975
    %v977 = vsub.f32 1.0, %v976
    %v978 = vmul.f32 %v975, %v977
    %v979 = vadd.f32 %v975, %v978
    %vm980 = vweird.f32 %v974
    %vm981 = vweird.f32 %v975
    %vm982 = vmor %vm980, %vm981
    %v983 = vsel %vm982, %v975, %v979
    %v984 = vand.u32 2147483647, %v974
    %vm985 = vcmp.eq.f32.partialorder %v984, 8.507059e+37
    %v986 = vand.u32 %v974, 2147483648
    %v987 = vor.u32 1.1754944e-38, %v986
    %v988 = vsel %vm985, %v987, %v983
    %v989 = vmul.f32 1.0, %v988
    %v990 = vsub.f32 1.0, %v989
    %v991 = vmul.f32 %v990, %v945
    %v992 = vtanh.pop %v970
    %994 = vrot.lane.b32.xlu0 %v992, 96
    %v995 = vpop.permute.xlu0 %994
    %v997 = vmul.f32 %v989, %v995
    %v998 = vadd.f32 %v991, %v997
    %v999 = vmul.f32 %v990, %v944
    %1001 = vrot.lane.b32.xlu0 %v998, 96
    %v1002 = vpop.permute.xlu0 %1001
    %v1003 = vsel %vm321, %v1002, 0
    %1005 = vmatpush.msra.mxu0 0.0
    %1006 = vmatpush.msra.mxu0 0.0
    %1007 = vmatpush.msra.mxu0 0.0
    %1008 = vmatpush.msra.mxu0 0.0
    %1009 = vmatpush.msra.mxu0 0.0
    %1010 = vmatpush.msra.mxu0 0.0
    %1011 = vmatpush.msra.mxu0 0.0
    %1012 = vmatpush.msra.mxu0 0.0
    %1013 = vmatpush.msra.mxu0 0.0
    %1014 = vmatpush.msra.mxu0 0.0
    %1015 = vmatpush.msra.mxu0 0.0
    %1016 = vmatpush.msra.mxu0 0.0
    %1017 = vmatpush.msra.mxu0 %v319
    %1018 = vmatpush.msra.mxu0 %v318
    %1019 = vmatpush.msra.mxu0 %v317
    %1020 = vmatpush.msra.mxu0 %v316
    %1021 = vmatmul.f32.gmra.mxu0 %v1003
    %v1022 = vpop.f32.mrf.mxu0
    %v1023 = vadd.f32 %v375, %v1022
    %1024 = vdwg.mxu0
    %1026 = vrot.lane.b32.xlu0 %v152, 32
    %v1027 = vpop.permute.xlu0 %1026
    %v1029 = vadd.f32 %v1023, %v1027
    %v1030 = vtanh.pop %v1029
    %v1031 = vmul.f32 %v989, %v1030
    %v1032 = vadd.f32 %v999, %v1031
    %v1033 = vadd.f32 %v1032, %v311
    %1034 = vst.msk [vmem:[#allocation2 + $0x38] sm:$0xff] %vm321, %v1033
    %v1035 = vld [vmem:[#allocation2] sm:$0xff]
    %v1036 = vld [vmem:[#allocation2 + $0x8] sm:$0xff]
    %v1037 = vld [vmem:[#allocation2 + $0x10] sm:$0xff]
    %v1038 = vld [vmem:[#allocation2 + $0x18] sm:$0xff]
    %v1039 = vld [vmem:[#allocation2 + $0x20] sm:$0xff]
    %v1040 = vld [vmem:[#allocation2 + $0x28] sm:$0xff]
    %v1041 = vld [vmem:[#allocation2 + $0x30] sm:$0xff]
    %v1042 = vld [vmem:[#allocation2 + $0x38] sm:$0xff]
    %v1043 = vld [vmem:[%s10] sm:$0xff]
    %v1044 = vld [vmem:[%s10 + $0x8] sm:$0xff]
    %v1045 = vld [vmem:[%s10 + $0x10] sm:$0xff]
    %v1046 = vld [vmem:[%s10 + $0x18] sm:$0xff]
    %v1047 = vld [vmem:[%s11] sm:$0x1]
    %v1049 = vperm.slane %v1047, 0
    %v1052 = vsel %vm321, %v1035, 0
    %v1055 = vsel %vm321, %v1036, 0
    %v1058 = vsel %vm321, %v1037, 0
    %v1061 = vsel %vm321, %v1038, 0
    %v1064 = vsel %vm321, %v1039, 0
    %v1067 = vsel %vm321, %v1040, 0
    %v1070 = vsel %vm321, %v1041, 0
    %v1073 = vsel %vm321, %v1042, 0
    %1075 = vmatpush.msra.mxu0 0.0
    %1076 = vmatpush.msra.mxu0 0.0
    %1077 = vmatpush.msra.mxu0 0.0
    %1078 = vmatpush.msra.mxu0 0.0
    %1079 = vmatpush.msra.mxu0 0.0
    %1080 = vmatpush.msra.mxu0 0.0
    %1081 = vmatpush.msra.mxu0 0.0
    %1082 = vmatpush.msra.mxu0 0.0
    %1083 = vmatpush.msra.mxu0 0.0
    %1084 = vmatpush.msra.mxu0 0.0
    %1085 = vmatpush.msra.mxu0 0.0
    %1086 = vmatpush.msra.mxu0 0.0
    %1087 = vmatpush.msra.mxu0 %v1046
    %1088 = vmatpush.msra.mxu0 %v1045
    %1089 = vmatpush.msra.mxu0 %v1044
    %1090 = vmatpush.msra.mxu0 %v1043
    %1091 = vmatmul.f32.gmra.mxu0 %v1052
    %v1092 = vpop.f32.mrf.mxu0
    %v1093 = vadd.f32 %v1049, %v1092
    %1094 = vmatmul.f32.gmra.mxu0 %v1055
    %v1095 = vpop.f32.mrf.mxu0
    %v1096 = vadd.f32 %v1049, %v1095
    %1097 = vmatmul.f32.gmra.mxu0 %v1058
    %v1098 = vpop.f32.mrf.mxu0
    %v1099 = vadd.f32 %v1049, %v1098
    %1100 = vmatmul.f32.gmra.mxu0 %v1061
    %v1101 = vpop.f32.mrf.mxu0
    %v1102 = vadd.f32 %v1049, %v1101
    %1103 = vmatmul.f32.gmra.mxu0 %v1064
    %v1104 = vpop.f32.mrf.mxu0
    %v1105 = vadd.f32 %v1049, %v1104
    %1106 = vmatmul.f32.gmra.mxu0 %v1067
    %v1107 = vpop.f32.mrf.mxu0
    %v1108 = vadd.f32 %v1049, %v1107
    %1109 = vmatmul.f32.gmra.mxu0 %v1070
    %v1110 = vpop.f32.mrf.mxu0
    %v1111 = vadd.f32 %v1049, %v1110
    %1112 = vmatmul.f32.gmra.mxu0 %v1073
    %v1113 = vpop.f32.mrf.mxu0
    %v1114 = vadd.f32 %v1049, %v1113
    %1115 = vdwg.mxu0
    %vm1116 = vcmask 15360
    %1117 = vst.msk [vmem:[%s12] sm:$0xff] %vm1116, %v1093
    %1118 = vst.msk [vmem:[%s12 + $0x8] sm:$0xff] %vm1116, %v1096
    %1119 = vst.msk [vmem:[%s12 + $0x10] sm:$0xff] %vm1116, %v1099
    %1120 = vst.msk [vmem:[%s12 + $0x18] sm:$0xff] %vm1116, %v1102
    %1121 = vst.msk [vmem:[%s12 + $0x20] sm:$0xff] %vm1116, %v1105
    %1122 = vst.msk [vmem:[%s12 + $0x28] sm:$0xff] %vm1116, %v1108
    %1123 = vst.msk [vmem:[%s12 + $0x30] sm:$0xff] %vm1116, %v1111
    %1124 = vst.msk [vmem:[%s12 + $0x38] sm:$0xff] %vm1116, %v1114
    // Predicated region
    $region58: #{tpu_custom_call.1} parent=1 // pred_check
      _
    $region59: #{tpu_custom_call.1} parent=1 // pred_check_branch
      %1126 = sbr.rel (0) target = $region61
    $region60: #{tpu_custom_call.1} parent=1 // pred_region
      _
    $region61: #{tpu_custom_call.1} parent=1 // pred_fallthru
      _
    // Predicated region
    $region62: #{tpu_custom_call.1} parent=1 // pred_check
      _
    $region63: #{tpu_custom_call.1} parent=1 // pred_check_branch
      %1128 = sbr.rel (0) target = $region65
    $region64: #{tpu_custom_call.1} parent=1 // pred_region
      _
    $region65: #{tpu_custom_call.1} parent=1 // pred_fallthru
      _
    %1129 = vsyncpa [#allocation4], 1
    %1130 = vsyncpa [#allocation6], 1

</llo_original>
